<compile_context>
chip_gen: v7x
topology: tpu7x:2x2x1
jax: 0.10.0
libtpu: 0.0.40
codegen_flags: <defaults>
</compile_context>

<pallas_src>
import jax
import jax.numpy as jnp
import numpy as np
from jax.experimental import pallas as pl
from jax.experimental.pallas import tpu as pltpu

EPS = 1e-5


# --------------------------------------------------------------------------
# Kernels (work on (H, W*C) slabs, lane axis = W*C)
# --------------------------------------------------------------------------
def _conv_banded(xp_scr, w_ref, cb_ref, H):
    """3x3 'SAME' conv as 3 banded matmuls over an H-padded (H+2, W*C) slab."""
    acc = jnp.dot(xp_scr[0:H, :], w_ref[0], preferred_element_type=jnp.float32)
    acc = acc + jnp.dot(xp_scr[1:H + 1, :], w_ref[1],
                        preferred_element_type=jnp.float32)
    acc = acc + jnp.dot(xp_scr[2:H + 2, :], w_ref[2],
                        preferred_element_type=jnp.float32)
    return acc + cb_ref[...]


def _conv1_kernel(x_ref, w_ref, cb_ref, y_ref, s_ref, q_ref, xp_scr):
    """conv1 + bias for one image; emits per-tile sum / sum-of-squares."""
    _, H, WC = x_ref.shape
    zrow = jnp.zeros((1, WC), jnp.float32)
    # Zero only the 1-row halo (W padding is folded into the banded weights).
    xp_scr[0:1, :] = zrow
    xp_scr[H + 1:H + 2, :] = zrow
    xp_scr[1:H + 1, :] = x_ref[0]

    acc = _conv_banded(xp_scr, w_ref, cb_ref, H)

    y_ref[0] = acc
    s_ref[0] = jnp.sum(acc, axis=0, keepdims=True)
    q_ref[0] = jnp.sum(acc * acc, axis=0, keepdims=True)


def _bn1_conv2_kernel(y1_ref, a1_ref, b1_ref, w_ref, cb_ref,
                      y2_ref, s_ref, q_ref, hp_scr):
    """BN1 (pre-folded scale/shift) + ReLU + conv2 + bias; per-tile stats."""
    _, H, WC = y1_ref.shape
    h1 = jnp.maximum(y1_ref[0] * a1_ref[...] + b1_ref[...], 0.0)

    zrow = jnp.zeros((1, WC), jnp.float32)
    hp_scr[0:1, :] = zrow
    hp_scr[H + 1:H + 2, :] = zrow
    hp_scr[1:H + 1, :] = h1

    acc = _conv_banded(hp_scr, w_ref, cb_ref, H)

    y2_ref[0] = acc
    s_ref[0] = jnp.sum(acc, axis=0, keepdims=True)
    q_ref[0] = jnp.sum(acc * acc, axis=0, keepdims=True)


def _bn2_residual_kernel(y2_ref, x_ref, a2_ref, b2_ref, o_ref):
    """BN2 (pre-folded) + residual add + ReLU."""
    h2 = y2_ref[0] * a2_ref[...] + b2_ref[...]
    o_ref[0] = jnp.maximum(h2 + x_ref[0], 0.0)


# --------------------------------------------------------------------------
# Wrapper-side helpers
# --------------------------------------------------------------------------
def _band_weights(w_hwio, W):
    """(KH, KW, Cin, Cout) -> (KH, W*Cin, W*Cout) block-banded matrices.

    big[kh, wi*Cin+ci, wo*Cout+co] = w[kh, wi-wo+1, ci, co] if |wi-wo|<=1 else 0
    so   out[h, wo, co] = sum_kh  x_Hpad[h+kh, :] @ big[kh]
    implements the 3x3 'SAME' conv with W-padding built into the band.
    """
    KH, KW, Cin, Cout = w_hwio.shape
    wi = jnp.arange(W)[:, None]
    wo = jnp.arange(W)[None, :]
    kw = wi - wo + (KW // 2)
    valid = (kw >= 0) & (kw < KW)
    kw = jnp.clip(kw, 0, KW - 1)
    big = w_hwio[:, kw]                                     # (KH, W, W, Cin, Cout)
    big = big * valid[None, :, :, None, None].astype(w_hwio.dtype)
    big = jnp.transpose(big, (0, 1, 3, 2, 4))               # (KH, W, Cin, W, Cout)
    return big.reshape(KH, W * Cin, W * Cout)


def _pack_lanes(v, W):
    """Per-channel vector (C,) -> packed (1, W*C) lane vector (lane = w*C + c)."""
    return jnp.tile(v.reshape(-1), W).reshape(1, -1)


def _bn_scale_shift(s, q, gamma, beta, count, W):
    """Reduce per-tile partial sums into folded BN scale/shift (packed)."""
    C = gamma.size
    tot = jnp.sum(s, axis=(0, 1)).reshape(W, C).sum(axis=0)      # (C,)
    totsq = jnp.sum(q, axis=(0, 1)).reshape(W, C).sum(axis=0)    # (C,)
    mu = tot / count
    var = jnp.maximum(totsq / count - mu * mu, 0.0)              # biased, f32
    a = gamma.reshape(-1) * jax.lax.rsqrt(var + EPS)
    b = beta.reshape(-1) - mu * a
    return _pack_lanes(a, W), _pack_lanes(b, W)


def _vmem_limit_bytes(H, WC):
    """Scoped-VMEM request from the actual per-tile footprint (with headroom)."""
    tile = H * WC * 4
    band = 3 * WC * WC * 4
    halo = (H + 2) * WC * 4
    need = 2 * (4 * tile + 6 * WC * 4) + band + halo   # double-buffered blocks
    return int(min(max(4 * need, 4 << 20), 32 << 20))


# --------------------------------------------------------------------------
# Forward (NCHW in / NCHW out, like PyTorch)
# --------------------------------------------------------------------------
@jax.jit
def residual_block(x_nchw, params):
    N, C, H, W = x_nchw.shape
    assert params["w1"].shape[-1] == C and params["w2"].shape[-1] == C, \
        "ResidualBlock residual add requires in_channels == out_channels"
    WC = W * C

    # NCHW -> lane-dense (N, H, W*C)
    x = jnp.transpose(x_nchw, (0, 2, 3, 1)).astype(jnp.float32).reshape(N, H, WC)

    w1b = _band_weights(params["w1"].astype(jnp.float32), W)
    w2b = _band_weights(params["w2"].astype(jnp.float32), W)
    cb1 = _pack_lanes(params["cb1"].astype(jnp.float32), W)
    cb2 = _pack_lanes(params["cb2"].astype(jnp.float32), W)

    tile_spec = pl.BlockSpec((1, H, WC), lambda i: (i, 0, 0))
    band_spec = pl.BlockSpec((3, WC, WC), lambda i: (0, 0, 0))
    vec_spec = pl.BlockSpec((1, WC), lambda i: (0, 0))
    stat_spec = pl.BlockSpec((1, 1, WC), lambda i: (i, 0, 0))

    act = jax.ShapeDtypeStruct((N, H, WC), jnp.float32)
    stat = jax.ShapeDtypeStruct((N, 1, WC), jnp.float32)

    cparams = pltpu.CompilerParams(
        dimension_semantics=("parallel",),
        vmem_limit_bytes=_vmem_limit_bytes(H, WC))

    # ---- pass A: conv1 (+bias) + partial BN1 statistics ----
    y1, s1, q1 = pl.pallas_call(
        _conv1_kernel,
        grid=(N,),
        in_specs=[tile_spec, band_spec, vec_spec],
        out_specs=(tile_spec, stat_spec, stat_spec),
        out_shape=(act, stat, stat),
        scratch_shapes=[pltpu.VMEM((H + 2, WC), jnp.float32)],
        compiler_params=cparams,
    )(x, w1b, cb1)

    a1, b1 = _bn_scale_shift(s1, q1, params["g1"], params["be1"],
                             float(N * H * W), W)

    # ---- pass B: BN1 + ReLU + conv2 (+bias) + partial BN2 statistics ----
    y2, s2, q2 = pl.pallas_call(
        _bn1_conv2_kernel,
        grid=(N,),
        in_specs=[tile_spec, vec_spec, vec_spec, band_spec, vec_spec],
        out_specs=(tile_spec, stat_spec, stat_spec),
        out_shape=(act, stat, stat),
        scratch_shapes=[pltpu.VMEM((H + 2, WC), jnp.float32)],
        compiler_params=cparams,
    )(y1, a1, b1, w2b, cb2)

    a2, b2 = _bn_scale_shift(s2, q2, params["g2"], params["be2"],
                             float(N * H * W), W)

    # ---- pass C: BN2 + residual + ReLU ----
    out = pl.pallas_call(
        _bn2_residual_kernel,
        grid=(N,),
        in_specs=[tile_spec, tile_spec, vec_spec, vec_spec],
        out_specs=tile_spec,
        out_shape=act,
        compiler_params=cparams,
    )(y2, x, a2, b2)

    # (N, H, W*C) -> NCHW
    return jnp.transpose(out.reshape(N, H, W, C), (0, 3, 1, 2))


# ---------------- pure-JAX reference (silent self-check) ----------------
def _ref_forward(x_nchw, params):
    x = jnp.transpose(x_nchw, (0, 2, 3, 1)).astype(jnp.float32)

    def conv(h, w_hwio, b):
        y = jax.lax.conv_general_dilated(
            h, w_hwio, window_strides=(1, 1), padding="SAME",
            dimension_numbers=("NHWC", "HWIO", "NHWC"))
        return y + b.reshape(1, 1, 1, -1)

    def bn(h, g, b):
        mu = jnp.mean(h, axis=(0, 1, 2), keepdims=True)
        var = jnp.mean((h - mu) ** 2, axis=(0, 1, 2), keepdims=True)
        return (h - mu) * jax.lax.rsqrt(var + EPS) * g.reshape(1, 1, 1, -1) \
               + b.reshape(1, 1, 1, -1)

    h = jnp.maximum(bn(conv(x, params["w1"], params["cb1"]),
                       params["g1"], params["be1"]), 0.0)
    h = bn(conv(h, params["w2"], params["cb2"]), params["g2"], params["be2"])
    out = jnp.maximum(h + x, 0.0)
    return jnp.transpose(out, (0, 3, 1, 2))


def _make_params(key, c):
    ks = jax.random.split(key, 8)
    return {
        "w1": jax.random.normal(ks[0], (3, 3, c, c), jnp.float32) * 0.2,
        "cb1": jax.random.normal(ks[1], (1, c), jnp.float32) * 0.1,
        "w2": jax.random.normal(ks[2], (3, 3, c, c), jnp.float32) * 0.2,
        "cb2": jax.random.normal(ks[3], (1, c), jnp.float32) * 0.1,
        "g1": 1.0 + 0.1 * jax.random.normal(ks[4], (1, c), jnp.float32),
        "be1": 0.1 * jax.random.normal(ks[5], (1, c), jnp.float32),
        "g2": 1.0 + 0.1 * jax.random.normal(ks[6], (1, c), jnp.float32),
        "be2": 0.1 * jax.random.normal(ks[7], (1, c), jnp.float32),
    }


if __name__ == "__main__":
    key = jax.random.PRNGKey(0)
    k_x, k_p = jax.random.split(key)

    N, C, H, W = 2, 4, 16, 16          # in_channels == out_channels (residual add)
    x = jax.random.normal(k_x, (N, C, H, W), jnp.float32)
    params = _make_params(k_p, C)

    out = jax.block_until_ready(residual_block(x, params))

    ref = jax.block_until_ready(_ref_forward(x, params))
    np.testing.assert_allclose(np.asarray(out), np.asarray(ref),
                               rtol=2e-4, atol=2e-4)
    assert out.shape == (N, C, H, W)
    assert bool(jnp.all(out >= 0.0))

    # TODO(synk): PyTorch BatchNorm2d (training mode) also updates running_mean/var
    # buffers as a side effect; that does not affect the forward output and is not
    # materialized here.
    print("KERNEL_OK")
</pallas_src>

<mosaic_0001>
module attributes {stable_mosaic.version = 11 : i64} {
  func.func @_conv1_kernel(%arg0: i32, %arg1: memref<1x16x64xf32, #tpu.memory_space<vmem>>, %arg2: memref<3x64x64xf32, #tpu.memory_space<vmem>>, %arg3: memref<1x64xf32, #tpu.memory_space<vmem>>, %arg4: memref<1x16x64xf32, #tpu.memory_space<vmem>>, %arg5: memref<1x1x64xf32, #tpu.memory_space<vmem>>, %arg6: memref<1x1x64xf32, #tpu.memory_space<vmem>>, %arg7: memref<18x64xf32, #tpu.memory_space<vmem>>) attributes {dimension_semantics = [#tpu.dimension_semantics<parallel>], iteration_bounds = array<i64: 2>, scalar_prefetch = 0 : i64, scratch_operands = 1 : i64, tpu.core_type = #tpu.core_type<tc>, window_params = [{transform_indices = @transform_0, window_bounds = array<i64: 1, 16, 64>}, {pipeline_mode = #tpu.pipeline_mode<synchronous>, transform_indices = @transform_1, window_bounds = array<i64: 3, 64, 64>}, {pipeline_mode = #tpu.pipeline_mode<synchronous>, transform_indices = @transform_2, window_bounds = array<i64: 1, 64>}, {transform_indices = @transform_3, window_bounds = array<i64: 1, 16, 64>}, {transform_indices = @transform_4, window_bounds = array<i64: 1, 1, 64>}, {transform_indices = @transform_5, window_bounds = array<i64: 1, 1, 64>}]} {
    %cst = arith.constant 0.000000e+00 : f32
    %0 = vector.broadcast %cst : f32 to vector<1x64xf32>
    %c0 = arith.constant 0 : index
    %c0_0 = arith.constant 0 : index
    %1 = vector.load %arg7[%c0, %c0_0] : memref<18x64xf32, #tpu.memory_space<vmem>>, vector<1x64xf32>
    tpu.vector_store %arg7[%c0, %c0_0], %0 {strides = array<i32>} : memref<18x64xf32, #tpu.memory_space<vmem>>, vector<1x64xf32>,
    %c17 = arith.constant 17 : index
    %c0_1 = arith.constant 0 : index
    %2 = vector.load %arg7[%c17, %c0_1] : memref<18x64xf32, #tpu.memory_space<vmem>>, vector<1x64xf32>
    tpu.vector_store %arg7[%c17, %c0_1], %0 {strides = array<i32>} : memref<18x64xf32, #tpu.memory_space<vmem>>, vector<1x64xf32>,
    %c0_2 = arith.constant 0 : index
    %c0_3 = arith.constant 0 : index
    %c0_4 = arith.constant 0 : index
    %3 = vector.load %arg1[%c0_2, %c0_3, %c0_4] : memref<1x16x64xf32, #tpu.memory_space<vmem>>, vector<1x16x64xf32>
    %4 = vector.shape_cast %3 : vector<1x16x64xf32> to vector<16x64xf32>
    %c1 = arith.constant 1 : index
    %c0_5 = arith.constant 0 : index
    %5 = vector.load %arg7[%c1, %c0_5] : memref<18x64xf32, #tpu.memory_space<vmem>>, vector<16x64xf32>
    tpu.vector_store %arg7[%c1, %c0_5], %4 {strides = array<i32>} : memref<18x64xf32, #tpu.memory_space<vmem>>, vector<16x64xf32>,
    %c0_6 = arith.constant 0 : index
    %c0_7 = arith.constant 0 : index
    %6 = vector.load %arg7[%c0_6, %c0_7] : memref<18x64xf32, #tpu.memory_space<vmem>>, vector<16x64xf32>
    %c0_8 = arith.constant 0 : index
    %c0_9 = arith.constant 0 : index
    %c0_10 = arith.constant 0 : index
    %7 = vector.load %arg2[%c0_8, %c0_9, %c0_10] : memref<3x64x64xf32, #tpu.memory_space<vmem>>, vector<1x64x64xf32>
    %8 = vector.shape_cast %7 : vector<1x64x64xf32> to vector<64x64xf32>
    %cst_11 = arith.constant dense<0.000000e+00> : vector<16x64xf32>
    %9 = tpu.matmul %6, %8, %cst_11 {dimension_numbers = #tpu.dot_dimension_numbers<[1], [0], [0], [1], [0, 0, 1, 1], [], []>} : vector<16x64xf32>, vector<64x64xf32>, vector<16x64xf32> -> vector<16x64xf32>
    %c1_12 = arith.constant 1 : index
    %c0_13 = arith.constant 0 : index
    %10 = vector.load %arg7[%c1_12, %c0_13] : memref<18x64xf32, #tpu.memory_space<vmem>>, vector<16x64xf32>
    %c1_14 = arith.constant 1 : index
    %c0_15 = arith.constant 0 : index
    %c0_16 = arith.constant 0 : index
    %11 = vector.load %arg2[%c1_14, %c0_15, %c0_16] : memref<3x64x64xf32, #tpu.memory_space<vmem>>, vector<1x64x64xf32>
    %12 = vector.shape_cast %11 : vector<1x64x64xf32> to vector<64x64xf32>
    %cst_17 = arith.constant dense<0.000000e+00> : vector<16x64xf32>
    %13 = tpu.matmul %10, %12, %cst_17 {dimension_numbers = #tpu.dot_dimension_numbers<[1], [0], [0], [1], [0, 0, 1, 1], [], []>} : vector<16x64xf32>, vector<64x64xf32>, vector<16x64xf32> -> vector<16x64xf32>
    %14 = arith.addf %9, %13 : vector<16x64xf32>
    %c2 = arith.constant 2 : index
    %c0_18 = arith.constant 0 : index
    %15 = vector.load %arg7[%c2, %c0_18] : memref<18x64xf32, #tpu.memory_space<vmem>>, vector<16x64xf32>
    %c2_19 = arith.constant 2 : index
    %c0_20 = arith.constant 0 : index
    %c0_21 = arith.constant 0 : index
    %16 = vector.load %arg2[%c2_19, %c0_20, %c0_21] : memref<3x64x64xf32, #tpu.memory_space<vmem>>, vector<1x64x64xf32>
    %17 = vector.shape_cast %16 : vector<1x64x64xf32> to vector<64x64xf32>
    %cst_22 = arith.constant dense<0.000000e+00> : vector<16x64xf32>
    %18 = tpu.matmul %15, %17, %cst_22 {dimension_numbers = #tpu.dot_dimension_numbers<[1], [0], [0], [1], [0, 0, 1, 1], [], []>} : vector<16x64xf32>, vector<64x64xf32>, vector<16x64xf32> -> vector<16x64xf32>
    %19 = arith.addf %14, %18 : vector<16x64xf32>
    %c0_23 = arith.constant 0 : index
    %c0_24 = arith.constant 0 : index
    %20 = vector.load %arg3[%c0_23, %c0_24] : memref<1x64xf32, #tpu.memory_space<vmem>>, vector<1x64xf32>
    %21 = vector.broadcast %20 : vector<1x64xf32> to vector<16x64xf32>
    %22 = arith.addf %19, %21 : vector<16x64xf32>
    %c0_25 = arith.constant 0 : index
    %c0_26 = arith.constant 0 : index
    %c0_27 = arith.constant 0 : index
    %23 = vector.load %arg4[%c0_25, %c0_26, %c0_27] : memref<1x16x64xf32, #tpu.memory_space<vmem>>, vector<1x16x64xf32>
    %24 = vector.shape_cast %23 : vector<1x16x64xf32> to vector<16x64xf32>
    %25 = vector.shape_cast %22 : vector<16x64xf32> to vector<1x16x64xf32>
    tpu.vector_store %arg4[%c0_25, %c0_26, %c0_27], %25 {strides = array<i32>} : memref<1x16x64xf32, #tpu.memory_space<vmem>>, vector<1x16x64xf32>,
    %cst_28 = arith.constant dense<0.000000e+00> : vector<64xf32>
    %26 = vector.multi_reduction <add>, %22, %cst_28 [0] : vector<16x64xf32> to vector<64xf32>
    %27 = vector.shape_cast %26 : vector<64xf32> to vector<1x64xf32>
    %c0_29 = arith.constant 0 : index
    %c0_30 = arith.constant 0 : index
    %c0_31 = arith.constant 0 : index
    %28 = vector.load %arg5[%c0_29, %c0_30, %c0_31] : memref<1x1x64xf32, #tpu.memory_space<vmem>>, vector<1x1x64xf32>
    %29 = vector.shape_cast %28 : vector<1x1x64xf32> to vector<1x64xf32>
    %30 = vector.shape_cast %27 : vector<1x64xf32> to vector<1x1x64xf32>
    tpu.vector_store %arg5[%c0_29, %c0_30, %c0_31], %30 {strides = array<i32>} : memref<1x1x64xf32, #tpu.memory_space<vmem>>, vector<1x1x64xf32>,
    %31 = arith.mulf %22, %22 : vector<16x64xf32>
    %cst_32 = arith.constant dense<0.000000e+00> : vector<64xf32>
    %32 = vector.multi_reduction <add>, %31, %cst_32 [0] : vector<16x64xf32> to vector<64xf32>
    %33 = vector.shape_cast %32 : vector<64xf32> to vector<1x64xf32>
    %c0_33 = arith.constant 0 : index
    %c0_34 = arith.constant 0 : index
    %c0_35 = arith.constant 0 : index
    %34 = vector.load %arg6[%c0_33, %c0_34, %c0_35] : memref<1x1x64xf32, #tpu.memory_space<vmem>>, vector<1x1x64xf32>
    %35 = vector.shape_cast %34 : vector<1x1x64xf32> to vector<1x64xf32>
    %36 = vector.shape_cast %33 : vector<1x64xf32> to vector<1x1x64xf32>
    tpu.vector_store %arg6[%c0_33, %c0_34, %c0_35], %36 {strides = array<i32>} : memref<1x1x64xf32, #tpu.memory_space<vmem>>, vector<1x1x64xf32>,
    return
  }
  func.func @transform_0(%arg0: i32) -> (i32, i32, i32) {
    %c0_i32 = arith.constant 0 : i32
    %c0_i32_0 = arith.constant 0 : i32
    %c0_i32_1 = arith.constant 0 : i32
    return %arg0, %c0_i32, %c0_i32_0 : i32, i32, i32
  }
  func.func @transform_1(%arg0: i32) -> (i32, i32, i32) {
    %c0_i32 = arith.constant 0 : i32
    %c0_i32_0 = arith.constant 0 : i32
    %c0_i32_1 = arith.constant 0 : i32
    %c0_i32_2 = arith.constant 0 : i32
    return %c0_i32, %c0_i32_0, %c0_i32_1 : i32, i32, i32
  }
  func.func @transform_2(%arg0: i32) -> (i32, i32) {
    %c0_i32 = arith.constant 0 : i32
    %c0_i32_0 = arith.constant 0 : i32
    %c0_i32_1 = arith.constant 0 : i32
    return %c0_i32, %c0_i32_0 : i32, i32
  }
  func.func @transform_3(%arg0: i32) -> (i32, i32, i32) {
    %c0_i32 = arith.constant 0 : i32
    %c0_i32_0 = arith.constant 0 : i32
    %c0_i32_1 = arith.constant 0 : i32
    return %arg0, %c0_i32, %c0_i32_0 : i32, i32, i32
  }
  func.func @transform_4(%arg0: i32) -> (i32, i32, i32) {
    %c0_i32 = arith.constant 0 : i32
    %c0_i32_0 = arith.constant 0 : i32
    %c0_i32_1 = arith.constant 0 : i32
    return %arg0, %c0_i32, %c0_i32_0 : i32, i32, i32
  }
  func.func @transform_5(%arg0: i32) -> (i32, i32, i32) {
    %c0_i32 = arith.constant 0 : i32
    %c0_i32_0 = arith.constant 0 : i32
    %c0_i32_1 = arith.constant 0 : i32
    return %arg0, %c0_i32, %c0_i32_0 : i32, i32, i32
  }
}

module attributes {stable_mosaic.version = 11 : i64} {
  func.func @_bn1_conv2_kernel(%arg0: i32, %arg1: memref<1x16x64xf32, #tpu.memory_space<vmem>>, %arg2: memref<1x64xf32, #tpu.memory_space<vmem>>, %arg3: memref<1x64xf32, #tpu.memory_space<vmem>>, %arg4: memref<3x64x64xf32, #tpu.memory_space<vmem>>, %arg5: memref<1x64xf32, #tpu.memory_space<vmem>>, %arg6: memref<1x16x64xf32, #tpu.memory_space<vmem>>, %arg7: memref<1x1x64xf32, #tpu.memory_space<vmem>>, %arg8: memref<1x1x64xf32, #tpu.memory_space<vmem>>, %arg9: memref<18x64xf32, #tpu.memory_space<vmem>>) attributes {dimension_semantics = [#tpu.dimension_semantics<parallel>], iteration_bounds = array<i64: 2>, scalar_prefetch = 0 : i64, scratch_operands = 1 : i64, tpu.core_type = #tpu.core_type<tc>, window_params = [{transform_indices = @transform_0, window_bounds = array<i64: 1, 16, 64>}, {pipeline_mode = #tpu.pipeline_mode<synchronous>, transform_indices = @transform_1, window_bounds = array<i64: 1, 64>}, {pipeline_mode = #tpu.pipeline_mode<synchronous>, transform_indices = @transform_2, window_bounds = array<i64: 1, 64>}, {pipeline_mode = #tpu.pipeline_mode<synchronous>, transform_indices = @transform_3, window_bounds = array<i64: 3, 64, 64>}, {pipeline_mode = #tpu.pipeline_mode<synchronous>, transform_indices = @transform_4, window_bounds = array<i64: 1, 64>}, {transform_indices = @transform_5, window_bounds = array<i64: 1, 16, 64>}, {transform_indices = @transform_6, window_bounds = array<i64: 1, 1, 64>}, {transform_indices = @transform_7, window_bounds = array<i64: 1, 1, 64>}]} {
    %c0 = arith.constant 0 : index
    %c0_0 = arith.constant 0 : index
    %c0_1 = arith.constant 0 : index
    %0 = vector.load %arg1[%c0, %c0_0, %c0_1] : memref<1x16x64xf32, #tpu.memory_space<vmem>>, vector<1x16x64xf32>
    %1 = vector.shape_cast %0 : vector<1x16x64xf32> to vector<16x64xf32>
    %c0_2 = arith.constant 0 : index
    %c0_3 = arith.constant 0 : index
    %2 = vector.load %arg2[%c0_2, %c0_3] : memref<1x64xf32, #tpu.memory_space<vmem>>, vector<1x64xf32>
    %3 = vector.broadcast %2 : vector<1x64xf32> to vector<16x64xf32>
    %4 = arith.mulf %1, %3 : vector<16x64xf32>
    %c0_4 = arith.constant 0 : index
    %c0_5 = arith.constant 0 : index
    %5 = vector.load %arg3[%c0_4, %c0_5] : memref<1x64xf32, #tpu.memory_space<vmem>>, vector<1x64xf32>
    %6 = vector.broadcast %5 : vector<1x64xf32> to vector<16x64xf32>
    %7 = arith.addf %4, %6 : vector<16x64xf32>
    %cst = arith.constant 0.000000e+00 : f32
    %8 = vector.broadcast %cst : f32 to vector<16x64xf32>
    %9 = arith.maximumf %7, %8 : vector<16x64xf32>
    %cst_6 = arith.constant 0.000000e+00 : f32
    %10 = vector.broadcast %cst_6 : f32 to vector<1x64xf32>
    %c0_7 = arith.constant 0 : index
    %c0_8 = arith.constant 0 : index
    %11 = vector.load %arg9[%c0_7, %c0_8] : memref<18x64xf32, #tpu.memory_space<vmem>>, vector<1x64xf32>
    tpu.vector_store %arg9[%c0_7, %c0_8], %10 {strides = array<i32>} : memref<18x64xf32, #tpu.memory_space<vmem>>, vector<1x64xf32>,
    %c17 = arith.constant 17 : index
    %c0_9 = arith.constant 0 : index
    %12 = vector.load %arg9[%c17, %c0_9] : memref<18x64xf32, #tpu.memory_space<vmem>>, vector<1x64xf32>
    tpu.vector_store %arg9[%c17, %c0_9], %10 {strides = array<i32>} : memref<18x64xf32, #tpu.memory_space<vmem>>, vector<1x64xf32>,
    %c1 = arith.constant 1 : index
    %c0_10 = arith.constant 0 : index
    %13 = vector.load %arg9[%c1, %c0_10] : memref<18x64xf32, #tpu.memory_space<vmem>>, vector<16x64xf32>
    tpu.vector_store %arg9[%c1, %c0_10], %9 {strides = array<i32>} : memref<18x64xf32, #tpu.memory_space<vmem>>, vector<16x64xf32>,
    %c0_11 = arith.constant 0 : index
    %c0_12 = arith.constant 0 : index
    %14 = vector.load %arg9[%c0_11, %c0_12] : memref<18x64xf32, #tpu.memory_space<vmem>>, vector<16x64xf32>
    %c0_13 = arith.constant 0 : index
    %c0_14 = arith.constant 0 : index
    %c0_15 = arith.constant 0 : index
    %15 = vector.load %arg4[%c0_13, %c0_14, %c0_15] : memref<3x64x64xf32, #tpu.memory_space<vmem>>, vector<1x64x64xf32>
    %16 = vector.shape_cast %15 : vector<1x64x64xf32> to vector<64x64xf32>
    %cst_16 = arith.constant dense<0.000000e+00> : vector<16x64xf32>
    %17 = tpu.matmul %14, %16, %cst_16 {dimension_numbers = #tpu.dot_dimension_numbers<[1], [0], [0], [1], [0, 0, 1, 1], [], []>} : vector<16x64xf32>, vector<64x64xf32>, vector<16x64xf32> -> vector<16x64xf32>
    %c1_17 = arith.constant 1 : index
    %c0_18 = arith.constant 0 : index
    %18 = vector.load %arg9[%c1_17, %c0_18] : memref<18x64xf32, #tpu.memory_space<vmem>>, vector<16x64xf32>
    %c1_19 = arith.constant 1 : index
    %c0_20 = arith.constant 0 : index
    %c0_21 = arith.constant 0 : index
    %19 = vector.load %arg4[%c1_19, %c0_20, %c0_21] : memref<3x64x64xf32, #tpu.memory_space<vmem>>, vector<1x64x64xf32>
    %20 = vector.shape_cast %19 : vector<1x64x64xf32> to vector<64x64xf32>
    %cst_22 = arith.constant dense<0.000000e+00> : vector<16x64xf32>
    %21 = tpu.matmul %18, %20, %cst_22 {dimension_numbers = #tpu.dot_dimension_numbers<[1], [0], [0], [1], [0, 0, 1, 1], [], []>} : vector<16x64xf32>, vector<64x64xf32>, vector<16x64xf32> -> vector<16x64xf32>
    %22 = arith.addf %17, %21 : vector<16x64xf32>
    %c2 = arith.constant 2 : index
    %c0_23 = arith.constant 0 : index
    %23 = vector.load %arg9[%c2, %c0_23] : memref<18x64xf32, #tpu.memory_space<vmem>>, vector<16x64xf32>
    %c2_24 = arith.constant 2 : index
    %c0_25 = arith.constant 0 : index
    %c0_26 = arith.constant 0 : index
    %24 = vector.load %arg4[%c2_24, %c0_25, %c0_26] : memref<3x64x64xf32, #tpu.memory_space<vmem>>, vector<1x64x64xf32>
    %25 = vector.shape_cast %24 : vector<1x64x64xf32> to vector<64x64xf32>
    %cst_27 = arith.constant dense<0.000000e+00> : vector<16x64xf32>
    %26 = tpu.matmul %23, %25, %cst_27 {dimension_numbers = #tpu.dot_dimension_numbers<[1], [0], [0], [1], [0, 0, 1, 1], [], []>} : vector<16x64xf32>, vector<64x64xf32>, vector<16x64xf32> -> vector<16x64xf32>
    %27 = arith.addf %22, %26 : vector<16x64xf32>
    %c0_28 = arith.constant 0 : index
    %c0_29 = arith.constant 0 : index
    %28 = vector.load %arg5[%c0_28, %c0_29] : memref<1x64xf32, #tpu.memory_space<vmem>>, vector<1x64xf32>
    %29 = vector.broadcast %28 : vector<1x64xf32> to vector<16x64xf32>
    %30 = arith.addf %27, %29 : vector<16x64xf32>
    %c0_30 = arith.constant 0 : index
    %c0_31 = arith.constant 0 : index
    %c0_32 = arith.constant 0 : index
    %31 = vector.load %arg6[%c0_30, %c0_31, %c0_32] : memref<1x16x64xf32, #tpu.memory_space<vmem>>, vector<1x16x64xf32>
    %32 = vector.shape_cast %31 : vector<1x16x64xf32> to vector<16x64xf32>
    %33 = vector.shape_cast %30 : vector<16x64xf32> to vector<1x16x64xf32>
    tpu.vector_store %arg6[%c0_30, %c0_31, %c0_32], %33 {strides = array<i32>} : memref<1x16x64xf32, #tpu.memory_space<vmem>>, vector<1x16x64xf32>,
    %cst_33 = arith.constant dense<0.000000e+00> : vector<64xf32>
    %34 = vector.multi_reduction <add>, %30, %cst_33 [0] : vector<16x64xf32> to vector<64xf32>
    %35 = vector.shape_cast %34 : vector<64xf32> to vector<1x64xf32>
    %c0_34 = arith.constant 0 : index
    %c0_35 = arith.constant 0 : index
    %c0_36 = arith.constant 0 : index
    %36 = vector.load %arg7[%c0_34, %c0_35, %c0_36] : memref<1x1x64xf32, #tpu.memory_space<vmem>>, vector<1x1x64xf32>
    %37 = vector.shape_cast %36 : vector<1x1x64xf32> to vector<1x64xf32>
    %38 = vector.shape_cast %35 : vector<1x64xf32> to vector<1x1x64xf32>
    tpu.vector_store %arg7[%c0_34, %c0_35, %c0_36], %38 {strides = array<i32>} : memref<1x1x64xf32, #tpu.memory_space<vmem>>, vector<1x1x64xf32>,
    %39 = arith.mulf %30, %30 : vector<16x64xf32>
    %cst_37 = arith.constant dense<0.000000e+00> : vector<64xf32>
    %40 = vector.multi_reduction <add>, %39, %cst_37 [0] : vector<16x64xf32> to vector<64xf32>
    %41 = vector.shape_cast %40 : vector<64xf32> to vector<1x64xf32>
    %c0_38 = arith.constant 0 : index
    %c0_39 = arith.constant 0 : index
    %c0_40 = arith.constant 0 : index
    %42 = vector.load %arg8[%c0_38, %c0_39, %c0_40] : memref<1x1x64xf32, #tpu.memory_space<vmem>>, vector<1x1x64xf32>
    %43 = vector.shape_cast %42 : vector<1x1x64xf32> to vector<1x64xf32>
    %44 = vector.shape_cast %41 : vector<1x64xf32> to vector<1x1x64xf32>
    tpu.vector_store %arg8[%c0_38, %c0_39, %c0_40], %44 {strides = array<i32>} : memref<1x1x64xf32, #tpu.memory_space<vmem>>, vector<1x1x64xf32>,
    return
  }
  func.func @transform_0(%arg0: i32) -> (i32, i32, i32) {
    %c0_i32 = arith.constant 0 : i32
    %c0_i32_0 = arith.constant 0 : i32
    %c0_i32_1 = arith.constant 0 : i32
    return %arg0, %c0_i32, %c0_i32_0 : i32, i32, i32
  }
  func.func @transform_1(%arg0: i32) -> (i32, i32) {
    %c0_i32 = arith.constant 0 : i32
    %c0_i32_0 = arith.constant 0 : i32
    %c0_i32_1 = arith.constant 0 : i32
    return %c0_i32, %c0_i32_0 : i32, i32
  }
  func.func @transform_2(%arg0: i32) -> (i32, i32) {
    %c0_i32 = arith.constant 0 : i32
    %c0_i32_0 = arith.constant 0 : i32
    %c0_i32_1 = arith.constant 0 : i32
    return %c0_i32, %c0_i32_0 : i32, i32
  }
  func.func @transform_3(%arg0: i32) -> (i32, i32, i32) {
    %c0_i32 = arith.constant 0 : i32
    %c0_i32_0 = arith.constant 0 : i32
    %c0_i32_1 = arith.constant 0 : i32
    %c0_i32_2 = arith.constant 0 : i32
    return %c0_i32, %c0_i32_0, %c0_i32_1 : i32, i32, i32
  }
  func.func @transform_4(%arg0: i32) -> (i32, i32) {
    %c0_i32 = arith.constant 0 : i32
    %c0_i32_0 = arith.constant 0 : i32
    %c0_i32_1 = arith.constant 0 : i32
    return %c0_i32, %c0_i32_0 : i32, i32
  }
  func.func @transform_5(%arg0: i32) -> (i32, i32, i32) {
    %c0_i32 = arith.constant 0 : i32
    %c0_i32_0 = arith.constant 0 : i32
    %c0_i32_1 = arith.constant 0 : i32
    return %arg0, %c0_i32, %c0_i32_0 : i32, i32, i32
  }
  func.func @transform_6(%arg0: i32) -> (i32, i32, i32) {
    %c0_i32 = arith.constant 0 : i32
    %c0_i32_0 = arith.constant 0 : i32
    %c0_i32_1 = arith.constant 0 : i32
    return %arg0, %c0_i32, %c0_i32_0 : i32, i32, i32
  }
  func.func @transform_7(%arg0: i32) -> (i32, i32, i32) {
    %c0_i32 = arith.constant 0 : i32
    %c0_i32_0 = arith.constant 0 : i32
    %c0_i32_1 = arith.constant 0 : i32
    return %arg0, %c0_i32, %c0_i32_0 : i32, i32, i32
  }
}

module attributes {stable_mosaic.version = 11 : i64} {
  func.func @_bn2_residual_kernel(%arg0: i32, %arg1: memref<1x16x64xf32, #tpu.memory_space<vmem>>, %arg2: memref<1x16x64xf32, #tpu.memory_space<vmem>>, %arg3: memref<1x64xf32, #tpu.memory_space<vmem>>, %arg4: memref<1x64xf32, #tpu.memory_space<vmem>>, %arg5: memref<1x16x64xf32, #tpu.memory_space<vmem>>) attributes {dimension_semantics = [#tpu.dimension_semantics<parallel>], iteration_bounds = array<i64: 2>, scalar_prefetch = 0 : i64, scratch_operands = 0 : i64, tpu.core_type = #tpu.core_type<tc>, window_params = [{transform_indices = @transform_0, window_bounds = array<i64: 1, 16, 64>}, {transform_indices = @transform_1, window_bounds = array<i64: 1, 16, 64>}, {pipeline_mode = #tpu.pipeline_mode<synchronous>, transform_indices = @transform_2, window_bounds = array<i64: 1, 64>}, {pipeline_mode = #tpu.pipeline_mode<synchronous>, transform_indices = @transform_3, window_bounds = array<i64: 1, 64>}, {transform_indices = @transform_4, window_bounds = array<i64: 1, 16, 64>}]} {
    %c0 = arith.constant 0 : index
    %c0_0 = arith.constant 0 : index
    %c0_1 = arith.constant 0 : index
    %0 = vector.load %arg1[%c0, %c0_0, %c0_1] : memref<1x16x64xf32, #tpu.memory_space<vmem>>, vector<1x16x64xf32>
    %1 = vector.shape_cast %0 : vector<1x16x64xf32> to vector<16x64xf32>
    %c0_2 = arith.constant 0 : index
    %c0_3 = arith.constant 0 : index
    %2 = vector.load %arg3[%c0_2, %c0_3] : memref<1x64xf32, #tpu.memory_space<vmem>>, vector<1x64xf32>
    %3 = vector.broadcast %2 : vector<1x64xf32> to vector<16x64xf32>
    %4 = arith.mulf %1, %3 : vector<16x64xf32>
    %c0_4 = arith.constant 0 : index
    %c0_5 = arith.constant 0 : index
    %5 = vector.load %arg4[%c0_4, %c0_5] : memref<1x64xf32, #tpu.memory_space<vmem>>, vector<1x64xf32>
    %6 = vector.broadcast %5 : vector<1x64xf32> to vector<16x64xf32>
    %7 = arith.addf %4, %6 : vector<16x64xf32>
    %c0_6 = arith.constant 0 : index
    %c0_7 = arith.constant 0 : index
    %c0_8 = arith.constant 0 : index
    %8 = vector.load %arg2[%c0_6, %c0_7, %c0_8] : memref<1x16x64xf32, #tpu.memory_space<vmem>>, vector<1x16x64xf32>
    %9 = vector.shape_cast %8 : vector<1x16x64xf32> to vector<16x64xf32>
    %10 = arith.addf %7, %9 : vector<16x64xf32>
    %cst = arith.constant 0.000000e+00 : f32
    %11 = vector.broadcast %cst : f32 to vector<16x64xf32>
    %12 = arith.maximumf %10, %11 : vector<16x64xf32>
    %c0_9 = arith.constant 0 : index
    %c0_10 = arith.constant 0 : index
    %c0_11 = arith.constant 0 : index
    %13 = vector.load %arg5[%c0_9, %c0_10, %c0_11] : memref<1x16x64xf32, #tpu.memory_space<vmem>>, vector<1x16x64xf32>
    %14 = vector.shape_cast %13 : vector<1x16x64xf32> to vector<16x64xf32>
    %15 = vector.shape_cast %12 : vector<16x64xf32> to vector<1x16x64xf32>
    tpu.vector_store %arg5[%c0_9, %c0_10, %c0_11], %15 {strides = array<i32>} : memref<1x16x64xf32, #tpu.memory_space<vmem>>, vector<1x16x64xf32>,
    return
  }
  func.func @transform_0(%arg0: i32) -> (i32, i32, i32) {
    %c0_i32 = arith.constant 0 : i32
    %c0_i32_0 = arith.constant 0 : i32
    %c0_i32_1 = arith.constant 0 : i32
    return %arg0, %c0_i32, %c0_i32_0 : i32, i32, i32
  }
  func.func @transform_1(%arg0: i32) -> (i32, i32, i32) {
    %c0_i32 = arith.constant 0 : i32
    %c0_i32_0 = arith.constant 0 : i32
    %c0_i32_1 = arith.constant 0 : i32
    return %arg0, %c0_i32, %c0_i32_0 : i32, i32, i32
  }
  func.func @transform_2(%arg0: i32) -> (i32, i32) {
    %c0_i32 = arith.constant 0 : i32
    %c0_i32_0 = arith.constant 0 : i32
    %c0_i32_1 = arith.constant 0 : i32
    return %c0_i32, %c0_i32_0 : i32, i32
  }
  func.func @transform_3(%arg0: i32) -> (i32, i32) {
    %c0_i32 = arith.constant 0 : i32
    %c0_i32_0 = arith.constant 0 : i32
    %c0_i32_1 = arith.constant 0 : i32
    return %c0_i32, %c0_i32_0 : i32, i32
  }
  func.func @transform_4(%arg0: i32) -> (i32, i32, i32) {
    %c0_i32 = arith.constant 0 : i32
    %c0_i32_0 = arith.constant 0 : i32
    %c0_i32_1 = arith.constant 0 : i32
    return %arg0, %c0_i32, %c0_i32_0 : i32, i32, i32
  }
}

</mosaic_0001>

<llo_original>
// kernel: tile.30
$region0: #{tile.30}
  #allocation0 [shape = 's32[1]{0}', space=sflag, size = 0x4, scoped, tag = 'scoped memory for tile.30']
  %s0 = inlined_call_operand.vmem [shape: f32[4], index: 0, kind: input, shape index: {}]
  %s1 = inlined_call_operand.vmem [shape: f32[16,4], index: 1, kind: output, shape index: {}]
  // Predicated region
  $region2: #{tile.30} parent=0 // pred_check
    _
  $region3: #{tile.30} parent=0 // pred_check_branch
    %3 = sbr.rel (0) target = $region5
  $region4: #{tile.30} parent=0 // pred_region
    _
  $region5: #{tile.30} parent=0 // pred_fallthru
    _
  %v4 = vld [vmem:[%s0] ss:$0 sm:$0xff]
  %5 = vst [vmem:[%s1] sm:$0xff] %v4
  %s6 = scalar_lea.vmem %s1, 8
  %7 = vst [vmem:[%s6] sm:$0xff] %v4

// kernel: tile.31
$region0: #{tile.31}
  %s0 = inlined_call_operand.vmem [shape: f32[16,4], index: 0, kind: input, shape index: {}]
  %s1 = inlined_call_operand.vmem [shape: f32[1,64], index: 1, kind: output, shape index: {}]
  $region1: #{tile.31} parent=0
    #allocation0 [shape = 'u8[4096]{0}', space=vmem, size = 0x1000, scoped, tag = 'scoped mem for output reshape']
    %v2 = vld [vmem:[%s0] sm:$0x1]
    %vm3 = vcmask 31744
    %4 = vst.msk [vmem:[#allocation0] sm:$0x1] %vm3, %v2
    %s5 = scalar_lea.vmem %s0, 15
    %v6 = vld [vmem:[%s5] sm:$0x1]
    %7 = vrot.lane.b32.xlu0 %v6, 60
    %v8 = vpop.permute.xlu0 %7
    %vm9 = vcmask 523744
    %10 = vst.msk [vmem:[#allocation0] sm:$0x1] %vm9, %v8
    %s11 = scalar_lea.vmem %s0, 14
    %v12 = vld [vmem:[%s11] sm:$0x1]
    %13 = vrot.lane.b32.xlu0 %v12, 56
    %v14 = vpop.permute.xlu0 %13
    %vm15 = vcmask 490944
    %16 = vst.msk [vmem:[#allocation0] sm:$0x1] %vm15, %v14
    %s17 = scalar_lea.vmem %s0, 13
    %v18 = vld [vmem:[%s17] sm:$0x1]
    %19 = vrot.lane.b32.xlu0 %v18, 52
    %v20 = vpop.permute.xlu0 %19
    %vm21 = vcmask 458144
    %22 = vst.msk [vmem:[#allocation0] sm:$0x1] %vm21, %v20
    %s23 = scalar_lea.vmem %s0, 12
    %v24 = vld [vmem:[%s23] sm:$0x1]
    %25 = vrot.lane.b32.xlu0 %v24, 48
    %v26 = vpop.permute.xlu0 %25
    %vm27 = vcmask 425344
    %28 = vst.msk [vmem:[#allocation0] sm:$0x1] %vm27, %v26
    %s29 = scalar_lea.vmem %s0, 11
    %v30 = vld [vmem:[%s29] sm:$0x1]
    %31 = vrot.lane.b32.xlu0 %v30, 44
    %v32 = vpop.permute.xlu0 %31
    %vm33 = vcmask 392544
    %34 = vst.msk [vmem:[#allocation0] sm:$0x1] %vm33, %v32
    %s35 = scalar_lea.vmem %s0, 10
    %v36 = vld [vmem:[%s35] sm:$0x1]
    %37 = vrot.lane.b32.xlu0 %v36, 40
    %v38 = vpop.permute.xlu0 %37
    %vm39 = vcmask 359744
    %40 = vst.msk [vmem:[#allocation0] sm:$0x1] %vm39, %v38
    %s41 = scalar_lea.vmem %s0, 9
    %v42 = vld [vmem:[%s41] sm:$0x1]
    %43 = vrot.lane.b32.xlu0 %v42, 36
    %v44 = vpop.permute.xlu0 %43
    %vm45 = vcmask 326944
    %46 = vst.msk [vmem:[#allocation0] sm:$0x1] %vm45, %v44
    %s47 = scalar_lea.vmem %s0, 8
    %v48 = vld [vmem:[%s47] sm:$0x1]
    %49 = vrot.lane.b32.xlu0 %v48, 32
    %v50 = vpop.permute.xlu0 %49
    %vm51 = vcmask 294144
    %52 = vst.msk [vmem:[#allocation0] sm:$0x1] %vm51, %v50
    %s53 = scalar_lea.vmem %s0, 7
    %v54 = vld [vmem:[%s53] sm:$0x1]
    %55 = vrot.lane.b32.xlu0 %v54, 28
    %v56 = vpop.permute.xlu0 %55
    %vm57 = vcmask 261344
    %58 = vst.msk [vmem:[#allocation0] sm:$0x1] %vm57, %v56
    %s59 = scalar_lea.vmem %s0, 6
    %v60 = vld [vmem:[%s59] sm:$0x1]
    %61 = vrot.lane.b32.xlu0 %v60, 24
    %v62 = vpop.permute.xlu0 %61
    %vm63 = vcmask 228544
    %64 = vst.msk [vmem:[#allocation0] sm:$0x1] %vm63, %v62
    %s65 = scalar_lea.vmem %s0, 5
    %v66 = vld [vmem:[%s65] sm:$0x1]
    %67 = vrot.lane.b32.xlu0 %v66, 20
    %v68 = vpop.permute.xlu0 %67
    %vm69 = vcmask 195744
    %70 = vst.msk [vmem:[#allocation0] sm:$0x1] %vm69, %v68
    %s71 = scalar_lea.vmem %s0, 4
    %v72 = vld [vmem:[%s71] sm:$0x1]
    %73 = vrot.lane.b32.xlu0 %v72, 16
    %v74 = vpop.permute.xlu0 %73
    %vm75 = vcmask 162944
    %76 = vst.msk [vmem:[#allocation0] sm:$0x1] %vm75, %v74
    %s77 = scalar_lea.vmem %s0, 3
    %v78 = vld [vmem:[%s77] sm:$0x1]
    %79 = vrot.lane.b32.xlu0 %v78, 12
    %v80 = vpop.permute.xlu0 %79
    %vm81 = vcmask 130144
    %82 = vst.msk [vmem:[#allocation0] sm:$0x1] %vm81, %v80
    %s83 = scalar_lea.vmem %s0, 2
    %v84 = vld [vmem:[%s83] sm:$0x1]
    %85 = vrot.lane.b32.xlu0 %v84, 8
    %v86 = vpop.permute.xlu0 %85
    %vm87 = vcmask 97344
    %88 = vst.msk [vmem:[#allocation0] sm:$0x1] %vm87, %v86
    %s89 = scalar_lea.vmem %s0, 1
    %v90 = vld [vmem:[%s89] sm:$0x1]
    %91 = vrot.lane.b32.xlu0 %v90, 4
    %v92 = vpop.permute.xlu0 %91
    %vm93 = vcmask 64544
    %94 = vst.msk [vmem:[#allocation0] sm:$0x1] %vm93, %v92
    %s96 = sshllo.u32 0, 1
    %v98 = vld [vmem:[#allocation0] sm:%s96]
    %s99 = sshllo.u32 0, 1
    %100 = vst [vmem:[%s1] sm:%s99] %v98

// kernel: residual_block.3
$region0: #{residual_block.3}
  #allocation0 [shape = 'u32[]', space=smem, size = 0x4, offset = 0x4, fixed_abs, tag = 'smem constant byte address 0x4 - core index']
  #allocation1 [shape = 'u32[144,128]{1,0:T(1,128)}', space=vmem, size = 0x12000, scoped, tag = 'internal scratch']
  #allocation2 [shape = 'f32[18,64]{1,0:T(8,128)}', space=vmem, size = 0x3000, scoped, tag = 'scratch operand']
  %s0 = inlined_call_operand.vmem [shape: f32[2,16,64], index: 0, kind: input, shape index: {}]
  %s1 = inlined_call_operand.vmem [shape: f32[3,64,64], index: 1, kind: input, shape index: {}]
  %s2 = inlined_call_operand.vmem [shape: f32[1,64], index: 2, kind: input, shape index: {}]
  %s3 = inlined_call_operand.vmem [shape: f32[2,16,64], index: 3, kind: output, shape index: {0}]
  %s4 = inlined_call_operand.vmem [shape: f32[2,1,64], index: 4, kind: output, shape index: {1}]
  %s5 = inlined_call_operand.vmem [shape: f32[2,1,64], index: 5, kind: output, shape index: {2}]
  %6 = xla_tuple %s3, %s4, %s5
  %s7 = sld [smem:[#allocation0]]
  $region61: #{residual_block.3} parent=0
    _
  %s9 = ssub.s32 1, %s7
  %s10 = scalar_select 0, %s9, %s7
  loop: start=0, step=1, limit=4
  $region2: #{residual_block.3} parent=0 // loop_pre_header
    _
  $region3: #{residual_block.3} parent=0 // loop_header
    %s12 = sphi 0, %s16
    %p13 = scmp.ge.s32.totalorder %s12, 4
    %s22 = sphi 0, %s24
    %s25 = sphi 0, %s22
    %s26 = sphi 0, %s25
    %s42 = sphi 0, %s26
    %s46 = sphi 0, %s46
    %s48 = sphi 0, %s46
    %s49 = sphi 0, %s48
    %s63 = sphi 0, %s49
    %s67 = sphi 0, %s67
    %s69 = sphi 0, %s67
    %s70 = sphi 0, %s69
    %s84 = sphi 0, %s70
    %s90 = sphi 0, %s92
    %s93 = sphi 0, %s90
    %s94 = sphi 0, %s93
    %s110 = sphi 0, %s94
    %s116 = sphi 0, %s118
    %s119 = sphi 0, %s116
    %s120 = sphi 0, %s119
    %s136 = sphi 0, %s120
    %s142 = sphi 0, %s144
    %s145 = sphi 0, %s142
    %s146 = sphi 0, %s145
    %s162 = sphi 0, %s146
  $region4: #{residual_block.3} parent=0 // loop_header_branch
    %15 = sbr.rel (%p13) target = $region8
  $region5: #{residual_block.3} parent=0 // loop_body
    %s17 = ssub.s32 %s12, 1
    %s18 = ssub.s32 %s12, 2
    %s19 = sadd.s32 %s12, 1
    %s20 = ssub.s32 %s12, %s19
    %p21 = scmp.eq.s32.totalorder %s20, 0
    %s23 = sadd.s32 %s22, 1
    %s24 = scalar_select %p21, %s22, %s23
    %p27 = pneg %p21
    %p28 = scmp.eq.s32.totalorder %s12, 1
    %p29 = por %p27, %p28
    %p30 = scmp.ne.s32.totalorder %s22, %s25
    %p31 = scmp.eq.s32.totalorder %s12, 0
    %p32 = por %p30, %p31
    %p33 = scmp.ne.s32.totalorder %s22, %s25
    %p34 = scmp.eq.s32.totalorder %s17, 1
    %p35 = por %p33, %p34
    %p36 = scmp.ne.s32.totalorder %s25, %s26
    %p37 = scmp.eq.s32.totalorder %s17, 0
    %p38 = por %p36, %p37
    %p39 = scmp.ne.s32.totalorder %s25, %s26
    %p40 = scmp.eq.s32.totalorder %s18, 1
    %p41 = por %p39, %p40
    %p43 = scmp.ne.s32.totalorder %s26, %s42
    %p44 = scmp.eq.s32.totalorder %s18, 0
    %p45 = por %p43, %p44
    %s47 = sadd.s32 %s46, 1
    %p50 = scmp.eq.s32.totalorder %s12, 1
    %p51 = scmp.ne.s32.totalorder %s46, %s48
    %p52 = scmp.eq.s32.totalorder %s12, 0
    %p53 = por %p51, %p52
    %p54 = scmp.ne.s32.totalorder %s46, %s48
    %p55 = scmp.eq.s32.totalorder %s17, 1
    %p56 = por %p54, %p55
    %p57 = scmp.ne.s32.totalorder %s48, %s49
    %p58 = scmp.eq.s32.totalorder %s17, 0
    %p59 = por %p57, %p58
    %p60 = scmp.ne.s32.totalorder %s48, %s49
    %p61 = scmp.eq.s32.totalorder %s18, 1
    %p62 = por %p60, %p61
    %p64 = scmp.ne.s32.totalorder %s49, %s63
    %p65 = scmp.eq.s32.totalorder %s18, 0
    %p66 = por %p64, %p65
    %s68 = sadd.s32 %s67, 1
    %p71 = scmp.eq.s32.totalorder %s12, 1
    %p72 = scmp.ne.s32.totalorder %s67, %s69
    %p73 = scmp.eq.s32.totalorder %s12, 0
    %p74 = por %p72, %p73
    %p75 = scmp.ne.s32.totalorder %s67, %s69
    %p76 = scmp.eq.s32.totalorder %s17, 1
    %p77 = por %p75, %p76
    %p78 = scmp.ne.s32.totalorder %s69, %s70
    %p79 = scmp.eq.s32.totalorder %s17, 0
    %p80 = por %p78, %p79
    %p81 = scmp.ne.s32.totalorder %s69, %s70
    %p82 = scmp.eq.s32.totalorder %s18, 1
    %p83 = por %p81, %p82
    %p85 = scmp.ne.s32.totalorder %s70, %s84
    %p86 = scmp.eq.s32.totalorder %s18, 0
    %p87 = por %p85, %p86
    %s88 = ssub.s32 %s12, %s19
    %p89 = scmp.eq.s32.totalorder %s88, 0
    %s91 = sadd.s32 %s90, 1
    %s92 = scalar_select %p89, %s90, %s91
    %p95 = pneg %p89
    %p96 = scmp.eq.s32.totalorder %s12, 1
    %p97 = por %p95, %p96
    %p98 = scmp.ne.s32.totalorder %s90, %s93
    %p99 = scmp.eq.s32.totalorder %s12, 0
    %p100 = por %p98, %p99
    %p101 = scmp.ne.s32.totalorder %s90, %s93
    %p102 = scmp.eq.s32.totalorder %s17, 1
    %p103 = por %p101, %p102
    %p104 = scmp.ne.s32.totalorder %s93, %s94
    %p105 = scmp.eq.s32.totalorder %s17, 0
    %p106 = por %p104, %p105
    %p107 = scmp.ne.s32.totalorder %s93, %s94
    %p108 = scmp.eq.s32.totalorder %s18, 1
    %p109 = por %p107, %p108
    %p111 = scmp.ne.s32.totalorder %s94, %s110
    %p112 = scmp.eq.s32.totalorder %s18, 0
    %p113 = por %p111, %p112
    %s114 = ssub.s32 %s12, %s19
    %p115 = scmp.eq.s32.totalorder %s114, 0
    %s117 = sadd.s32 %s116, 1
    %s118 = scalar_select %p115, %s116, %s117
    %p121 = pneg %p115
    %p122 = scmp.eq.s32.totalorder %s12, 1
    %p123 = por %p121, %p122
    %p124 = scmp.ne.s32.totalorder %s116, %s119
    %p125 = scmp.eq.s32.totalorder %s12, 0
    %p126 = por %p124, %p125
    %p127 = scmp.ne.s32.totalorder %s116, %s119
    %p128 = scmp.eq.s32.totalorder %s17, 1
    %p129 = por %p127, %p128
    %p130 = scmp.ne.s32.totalorder %s119, %s120
    %p131 = scmp.eq.s32.totalorder %s17, 0
    %p132 = por %p130, %p131
    %p133 = scmp.ne.s32.totalorder %s119, %s120
    %p134 = scmp.eq.s32.totalorder %s18, 1
    %p135 = por %p133, %p134
    %p137 = scmp.ne.s32.totalorder %s120, %s136
    %p138 = scmp.eq.s32.totalorder %s18, 0
    %p139 = por %p137, %p138
    %s140 = ssub.s32 %s12, %s19
    %p141 = scmp.eq.s32.totalorder %s140, 0
    %s143 = sadd.s32 %s142, 1
    %s144 = scalar_select %p141, %s142, %s143
    %p147 = pneg %p141
    %p148 = scmp.eq.s32.totalorder %s12, 1
    %p149 = por %p147, %p148
    %p150 = scmp.ne.s32.totalorder %s142, %s145
    %p151 = scmp.eq.s32.totalorder %s12, 0
    %p152 = por %p150, %p151
    %p153 = scmp.ne.s32.totalorder %s142, %s145
    %p154 = scmp.eq.s32.totalorder %s17, 1
    %p155 = por %p153, %p154
    %p156 = scmp.ne.s32.totalorder %s145, %s146
    %p157 = scmp.eq.s32.totalorder %s17, 0
    %p158 = por %p156, %p157
    %p159 = scmp.ne.s32.totalorder %s145, %s146
    %p160 = scmp.eq.s32.totalorder %s18, 1
    %p161 = por %p159, %p160
    %p163 = scmp.ne.s32.totalorder %s146, %s162
    %p164 = scmp.eq.s32.totalorder %s18, 0
    %p165 = por %p163, %p164
    %p166 = scmp.le.s32.totalorder 1, %s12
    %p167 = scmp.lt.s32.totalorder %s12, 3
    %p168 = pnand %p166, %p167
    %p169 = pneg %p168
    // Predicated region
    $region9: #{residual_block.3} parent=5 // pred_check
      _
    $region10: #{residual_block.3} parent=5 // pred_check_branch
      %171 = sbr.rel (%p168) target = $region12
    $region11: #{residual_block.3} parent=5 // pred_region
      %s172 = ssub.s32 %s12, 1
      // Predicated region
      $region13: #{residual_block.3} parent=11 // pred_check
        %p173 = pneg %p59
      $region14: #{residual_block.3} parent=11 // pred_check_branch
        %175 = sbr.rel (%p173) target = $region16
      $region15: #{residual_block.3} parent=11 // pred_region
        _
      $region16: #{residual_block.3} parent=11 // pred_fallthru
        _
      // Predicated region
      $region17: #{residual_block.3} parent=11 // pred_check
        %p176 = pneg %p80
      $region18: #{residual_block.3} parent=11 // pred_check_branch
        %178 = sbr.rel (%p176) target = $region20
      $region19: #{residual_block.3} parent=11 // pred_region
        _
      $region20: #{residual_block.3} parent=11 // pred_fallthru
        _
    $region12: #{residual_block.3} parent=5 // pred_fallthru
      _
    %p179 = scmp.lt.s32.totalorder %s12, 2
    // Predicated region
    $region21: #{residual_block.3} parent=5 // pred_check
      %p180 = pneg %p179
    $region22: #{residual_block.3} parent=5 // pred_check_branch
      %182 = sbr.rel (%p180) target = $region24
    $region23: #{residual_block.3} parent=5 // pred_region
      // Predicated region
      $region25: #{residual_block.3} parent=23 // pred_check
        %p183 = pneg %p32
      $region26: #{residual_block.3} parent=23 // pred_check_branch
        %185 = sbr.rel (%p183) target = $region28
      $region27: #{residual_block.3} parent=23 // pred_region
        %p186 = scmp.lt.s32.totalorder %s12, 1
        %s187 = scalar_select %p186, %s12, 1
        %s188 = smul.addr %s187, 2
        %s189 = smul.addr %s188, 8
        %s190 = scalar_lea.vmem %s0, %s189
      $region28: #{residual_block.3} parent=23 // pred_fallthru
        _
    $region24: #{residual_block.3} parent=5 // pred_fallthru
      _
    %p191 = scmp.le.s32.totalorder 1, %s12
    %p192 = scmp.lt.s32.totalorder %s12, 3
    %p193 = pnand %p191, %p192
    %p194 = pneg %p193
    // Predicated region
    $region29: #{residual_block.3} parent=5 // pred_check
      _
    $region30: #{residual_block.3} parent=5 // pred_check_branch
      %196 = sbr.rel (%p193) target = $region32
    $region31: #{residual_block.3} parent=5 // pred_region
      %s197 = ssub.s32 %s12, 1
      %p198 = scmp.lt.s32.totalorder %s17, 1
      %s199 = scalar_select %p198, %s17, 1
      %s200 = smul.addr %s199, 2
      %s201 = smul.addr %s200, 8
      %s202 = scalar_lea.vmem %s0, %s201
      %p203 = pneg %p38
      %p204 = pneg %p35
      %p205 = pneg %p59
      %p206 = pneg %p56
      %p207 = pneg %p80
      %p208 = pneg %p77
      %p209 = pneg %p106
      %p210 = pneg %p103
      %p211 = scmp.lt.s32.totalorder %s17, 1
      %s212 = scalar_select %p211, %s17, 1
      %s213 = smul.addr %s212, 2
      %s214 = smul.addr %s213, 8
      %s215 = scalar_lea.vmem %s3, %s214
      %p216 = pneg %p132
      %p217 = pneg %p129
      %p218 = scmp.lt.s32.totalorder %s17, 1
      %s219 = scalar_select %p218, %s17, 1
      %s220 = scalar_lea.vmem %s4, %s219
      %p221 = pneg %p158
      %p222 = pneg %p155
      %p223 = scmp.lt.s32.totalorder %s17, 1
      %s224 = scalar_select %p223, %s17, 1
      %s225 = scalar_lea.vmem %s5, %s224
      %p226 = scmp.lt.s32.totalorder %s17, 1
      %s227 = scalar_select %p226, %s17, 1
      %s228 = smul.addr %s227, 2
      %s229 = smul.addr %s228, 8
      %s230 = scalar_lea.vmem %s0, %s229
      %p231 = scmp.lt.s32.totalorder %s17, 1
      %s232 = scalar_select %p231, %s17, 1
      %s233 = smul.addr %s232, 2
      %s234 = smul.addr %s233, 8
      %s235 = scalar_lea.vmem %s3, %s234
      %p236 = scmp.lt.s32.totalorder %s17, 1
      %s237 = scalar_select %p236, %s17, 1
      %s238 = scalar_lea.vmem %s4, %s237
      %p239 = scmp.lt.s32.totalorder %s17, 1
      %s240 = scalar_select %p239, %s17, 1
      %s241 = scalar_lea.vmem %s5, %s240
      %vm242 = vcmask 516096
      %243 = vst.msk [vmem:[#allocation2] sm:$0x1] %vm242, 0.0
      %244 = vst.msk [vmem:[#allocation2 + $0x11] sm:$0x1] %vm242, 0.0
      %v245 = vld [vmem:[%s230] sm:$0xff]
      %v246 = vld [vmem:[%s230 + $0x8] sm:$0xff]
      %vm247 = vcmask 523264
      %248 = vst.msk [vmem:[#allocation2 + $0x1] sm:$0xff] %vm247, %v245
      %249 = vst.msk [vmem:[#allocation2 + $0x9] sm:$0xff] %vm247, %v246
      %v250 = vld [vmem:[#allocation2] sm:$0xff]
      %v251 = vld [vmem:[#allocation2 + $0x8] sm:$0xff]
      %v252 = vld [vmem:[%s1] sm:$0xff]
      %v253 = vld [vmem:[%s1 + $0x8] sm:$0xff]
      %v254 = vld [vmem:[%s1 + $0x10] sm:$0xff]
      %v255 = vld [vmem:[%s1 + $0x18] sm:$0xff]
      %v256 = vld [vmem:[%s1 + $0x20] sm:$0xff]
      %v257 = vld [vmem:[%s1 + $0x28] sm:$0xff]
      %v258 = vld [vmem:[%s1 + $0x30] sm:$0xff]
      %v259 = vld [vmem:[%s1 + $0x38] sm:$0xff]
      %v260 = vld [vmem:[#allocation2 + $0x1] sm:$0xff]
      %v261 = vld [vmem:[#allocation2 + $0x9] sm:$0xff]
      %s262 = scalar_lea.vmem %s1, 64
      %v263 = vld [vmem:[%s262] sm:$0xff]
      %v264 = vld [vmem:[%s262 + $0x8] sm:$0xff]
      %v265 = vld [vmem:[%s262 + $0x10] sm:$0xff]
      %v266 = vld [vmem:[%s262 + $0x18] sm:$0xff]
      %v267 = vld [vmem:[%s262 + $0x20] sm:$0xff]
      %v268 = vld [vmem:[%s262 + $0x28] sm:$0xff]
      %v269 = vld [vmem:[%s262 + $0x30] sm:$0xff]
      %v270 = vld [vmem:[%s262 + $0x38] sm:$0xff]
      %v272 = vsel %vm247, %v260, 0
      %v275 = vsel %vm247, %v261, 0
      %277 = vmatprep.subr.mxu0 0.0
      %278 = vmatpush1.msra.mxu0 %v263
      %279 = vmatprep.subr.mxu0 0.0
      %280 = vmatpush1.msra.mxu0 %v264
      %281 = vmatprep.subr.mxu0 0.0
      %282 = vmatpush1.msra.mxu0 %v265
      %283 = vmatprep.subr.mxu0 0.0
      %284 = vmatpush1.msra.mxu0 %v266
      %285 = vmatprep.subr.mxu0 0.0
      %286 = vmatpush1.msra.mxu0 %v267
      %287 = vmatprep.subr.mxu0 0.0
      %288 = vmatpush1.msra.mxu0 %v268
      %289 = vmatprep.subr.mxu0 0.0
      %290 = vmatpush1.msra.mxu0 %v269
      %291 = vmatprep.subr.mxu0 0.0
      %292 = vmatpush1.msra.mxu0 %v270
      %293 = vmatprep.subr.mxu0 0.0
      %294 = vmatpush1.msra.mxu0 0.0
      %295 = vmatprep.subr.mxu0 0.0
      %296 = vmatpush1.msra.mxu0 0.0
      %297 = vmatprep.subr.mxu0 0.0
      %298 = vmatpush1.msra.mxu0 0.0
      %299 = vmatprep.subr.mxu0 0.0
      %300 = vmatpush1.msra.mxu0 0.0
      %301 = vmatprep.subr.mxu0 0.0
      %302 = vmatpush1.msra.mxu0 0.0
      %303 = vmatprep.subr.mxu0 0.0
      %304 = vmatpush1.msra.mxu0 0.0
      %305 = vmatprep.subr.mxu0 0.0
      %306 = vmatpush1.msra.mxu0 0.0
      %307 = vmatprep.subr.mxu0 0.0
      %308 = vmatpush1.msra.mxu0 0.0
      %309 = vmatprep.subr.mxu0 0.0
      %310 = vmatpush1.msra.mxu0 0.0
      %311 = vmatprep.subr.mxu0 0.0
      %312 = vmatpush1.msra.mxu0 0.0
      %313 = vmatprep.subr.mxu0 0.0
      %314 = vmatpush1.msra.mxu0 0.0
      %315 = vmatprep.subr.mxu0 0.0
      %316 = vmatpush1.msra.mxu0 0.0
      %317 = vmatprep.subr.mxu0 0.0
      %318 = vmatpush1.msra.mxu0 0.0
      %319 = vmatprep.subr.mxu0 0.0
      %320 = vmatpush1.msra.mxu0 0.0
      %321 = vmatprep.subr.mxu0 0.0
      %322 = vmatpush1.msra.mxu0 0.0
      %323 = vmatprep.subr.mxu0 0.0
      %324 = vmatpush1.msra.mxu0 0.0
      %325 = vmatprep.subr.mxu0 0.0
      %326 = vmatpush1.msra.mxu0 0.0
      %327 = vmatprep.subr.mxu0 0.0
      %328 = vmatpush1.msra.mxu0 0.0
      %329 = vmatprep.subr.mxu0 0.0
      %330 = vmatpush1.msra.mxu0 0.0
      %331 = vmatprep.subr.mxu0 0.0
      %332 = vmatpush1.msra.mxu0 0.0
      %333 = vmatprep.subr.mxu0 0.0
      %334 = vmatpush1.msra.mxu0 0.0
      %335 = vmatprep.subr.mxu0 0.0
      %336 = vmatpush1.msra.mxu0 0.0
      %337 = vmatprep.subr.mxu0 0.0
      %338 = vmatpush1.msra.mxu0 0.0
      %339 = vmatprep.subr.mxu0 0.0
      %340 = vmatpush1.msra.mxu0 0.0
      %341 = vmatprep.mubr.f32.mxu0 0.0
      %342 = vmatmul.mubr.f32.gmra.mrb[0].mxu0 %v272
      %v343 = vpop.f32.mrb[0].mxu0
      %v344 = vadd.f32 0.0, %v343
      %v345 = vpop.f32.mrb[0].mxu0
      %346 = vmatprep.mubr.f32.mxu0 0.0
      %347 = vmatmul.mubr.f32.gmra.mrb[0].mxu0 %v275
      %v348 = vpop.f32.mrb[0].mxu0
      %v349 = vadd.f32 0.0, %v348
      %v350 = vpop.f32.mrb[0].mxu0
      %351 = vdwg.mxu0
      %v353 = vsel %vm247, %v250, 0
      %v356 = vsel %vm247, %v251, 0
      %358 = vmatprep.subr.mxu0 0.0
      %359 = vmatpush1.msra.mxu0 %v252
      %360 = vmatprep.subr.mxu0 0.0
      %361 = vmatpush1.msra.mxu0 %v253
      %362 = vmatprep.subr.mxu0 0.0
      %363 = vmatpush1.msra.mxu0 %v254
      %364 = vmatprep.subr.mxu0 0.0
      %365 = vmatpush1.msra.mxu0 %v255
      %366 = vmatprep.subr.mxu0 0.0
      %367 = vmatpush1.msra.mxu0 %v256
      %368 = vmatprep.subr.mxu0 0.0
      %369 = vmatpush1.msra.mxu0 %v257
      %370 = vmatprep.subr.mxu0 0.0
      %371 = vmatpush1.msra.mxu0 %v258
      %372 = vmatprep.subr.mxu0 0.0
      %373 = vmatpush1.msra.mxu0 %v259
      %374 = vmatprep.subr.mxu0 0.0
      %375 = vmatpush1.msra.mxu0 0.0
      %376 = vmatprep.subr.mxu0 0.0
      %377 = vmatpush1.msra.mxu0 0.0
      %378 = vmatprep.subr.mxu0 0.0
      %379 = vmatpush1.msra.mxu0 0.0
      %380 = vmatprep.subr.mxu0 0.0
      %381 = vmatpush1.msra.mxu0 0.0
      %382 = vmatprep.subr.mxu0 0.0
      %383 = vmatpush1.msra.mxu0 0.0
      %384 = vmatprep.subr.mxu0 0.0
      %385 = vmatpush1.msra.mxu0 0.0
      %386 = vmatprep.subr.mxu0 0.0
      %387 = vmatpush1.msra.mxu0 0.0
      %388 = vmatprep.subr.mxu0 0.0
      %389 = vmatpush1.msra.mxu0 0.0
      %390 = vmatprep.subr.mxu0 0.0
      %391 = vmatpush1.msra.mxu0 0.0
      %392 = vmatprep.subr.mxu0 0.0
      %393 = vmatpush1.msra.mxu0 0.0
      %394 = vmatprep.subr.mxu0 0.0
      %395 = vmatpush1.msra.mxu0 0.0
      %396 = vmatprep.subr.mxu0 0.0
      %397 = vmatpush1.msra.mxu0 0.0
      %398 = vmatprep.subr.mxu0 0.0
      %399 = vmatpush1.msra.mxu0 0.0
      %400 = vmatprep.subr.mxu0 0.0
      %401 = vmatpush1.msra.mxu0 0.0
      %402 = vmatprep.subr.mxu0 0.0
      %403 = vmatpush1.msra.mxu0 0.0
      %404 = vmatprep.subr.mxu0 0.0
      %405 = vmatpush1.msra.mxu0 0.0
      %406 = vmatprep.subr.mxu0 0.0
      %407 = vmatpush1.msra.mxu0 0.0
      %408 = vmatprep.subr.mxu0 0.0
      %409 = vmatpush1.msra.mxu0 0.0
      %410 = vmatprep.subr.mxu0 0.0
      %411 = vmatpush1.msra.mxu0 0.0
      %412 = vmatprep.subr.mxu0 0.0
      %413 = vmatpush1.msra.mxu0 0.0
      %414 = vmatprep.subr.mxu0 0.0
      %415 = vmatpush1.msra.mxu0 0.0
      %416 = vmatprep.subr.mxu0 0.0
      %417 = vmatpush1.msra.mxu0 0.0
      %418 = vmatprep.subr.mxu0 0.0
      %419 = vmatpush1.msra.mxu0 0.0
      %420 = vmatprep.subr.mxu0 0.0
      %421 = vmatpush1.msra.mxu0 0.0
      %422 = vmatprep.mubr.f32.mxu0 0.0
      %423 = vmatmul.mubr.f32.gmra.mrb[0].mxu0 %v353
      %v424 = vpop.f32.mrb[0].mxu0
      %v425 = vadd.f32 %v344, %v424
      %v426 = vpop.f32.mrb[0].mxu0
      %427 = vmatprep.mubr.f32.mxu0 0.0
      %428 = vmatmul.mubr.f32.gmra.mrb[0].mxu0 %v356
      %v429 = vpop.f32.mrb[0].mxu0
      %v430 = vadd.f32 %v349, %v429
      %v431 = vpop.f32.mrb[0].mxu0
      %432 = vdwg.mxu0
      %v433 = vld [vmem:[#allocation2 + $0x2] sm:$0xff]
      %v434 = vld [vmem:[#allocation2 + $0xa] sm:$0xff]
      %s435 = scalar_lea.vmem %s1, 128
      %v436 = vld [vmem:[%s435] sm:$0xff]
      %v437 = vld [vmem:[%s435 + $0x8] sm:$0xff]
      %v438 = vld [vmem:[%s435 + $0x10] sm:$0xff]
      %v439 = vld [vmem:[%s435 + $0x18] sm:$0xff]
      %v440 = vld [vmem:[%s435 + $0x20] sm:$0xff]
      %v441 = vld [vmem:[%s435 + $0x28] sm:$0xff]
      %v442 = vld [vmem:[%s435 + $0x30] sm:$0xff]
      %v443 = vld [vmem:[%s435 + $0x38] sm:$0xff]
      %v445 = vsel %vm247, %v433, 0
      %v448 = vsel %vm247, %v434, 0
      %450 = vmatprep.subr.mxu0 0.0
      %451 = vmatpush1.msra.mxu0 %v436
      %452 = vmatprep.subr.mxu0 0.0
      %453 = vmatpush1.msra.mxu0 %v437
      %454 = vmatprep.subr.mxu0 0.0
      %455 = vmatpush1.msra.mxu0 %v438
      %456 = vmatprep.subr.mxu0 0.0
      %457 = vmatpush1.msra.mxu0 %v439
      %458 = vmatprep.subr.mxu0 0.0
      %459 = vmatpush1.msra.mxu0 %v440
      %460 = vmatprep.subr.mxu0 0.0
      %461 = vmatpush1.msra.mxu0 %v441
      %462 = vmatprep.subr.mxu0 0.0
      %463 = vmatpush1.msra.mxu0 %v442
      %464 = vmatprep.subr.mxu0 0.0
      %465 = vmatpush1.msra.mxu0 %v443
      %466 = vmatprep.subr.mxu0 0.0
      %467 = vmatpush1.msra.mxu0 0.0
      %468 = vmatprep.subr.mxu0 0.0
      %469 = vmatpush1.msra.mxu0 0.0
      %470 = vmatprep.subr.mxu0 0.0
      %471 = vmatpush1.msra.mxu0 0.0
      %472 = vmatprep.subr.mxu0 0.0
      %473 = vmatpush1.msra.mxu0 0.0
      %474 = vmatprep.subr.mxu0 0.0
      %475 = vmatpush1.msra.mxu0 0.0
      %476 = vmatprep.subr.mxu0 0.0
      %477 = vmatpush1.msra.mxu0 0.0
      %478 = vmatprep.subr.mxu0 0.0
      %479 = vmatpush1.msra.mxu0 0.0
      %480 = vmatprep.subr.mxu0 0.0
      %481 = vmatpush1.msra.mxu0 0.0
      %482 = vmatprep.subr.mxu0 0.0
      %483 = vmatpush1.msra.mxu0 0.0
      %484 = vmatprep.subr.mxu0 0.0
      %485 = vmatpush1.msra.mxu0 0.0
      %486 = vmatprep.subr.mxu0 0.0
      %487 = vmatpush1.msra.mxu0 0.0
      %488 = vmatprep.subr.mxu0 0.0
      %489 = vmatpush1.msra.mxu0 0.0
      %490 = vmatprep.subr.mxu0 0.0
      %491 = vmatpush1.msra.mxu0 0.0
      %492 = vmatprep.subr.mxu0 0.0
      %493 = vmatpush1.msra.mxu0 0.0
      %494 = vmatprep.subr.mxu0 0.0
      %495 = vmatpush1.msra.mxu0 0.0
      %496 = vmatprep.subr.mxu0 0.0
      %497 = vmatpush1.msra.mxu0 0.0
      %498 = vmatprep.subr.mxu0 0.0
      %499 = vmatpush1.msra.mxu0 0.0
      %500 = vmatprep.subr.mxu0 0.0
      %501 = vmatpush1.msra.mxu0 0.0
      %502 = vmatprep.subr.mxu0 0.0
      %503 = vmatpush1.msra.mxu0 0.0
      %504 = vmatprep.subr.mxu0 0.0
      %505 = vmatpush1.msra.mxu0 0.0
      %506 = vmatprep.subr.mxu0 0.0
      %507 = vmatpush1.msra.mxu0 0.0
      %508 = vmatprep.subr.mxu0 0.0
      %509 = vmatpush1.msra.mxu0 0.0
      %510 = vmatprep.subr.mxu0 0.0
      %511 = vmatpush1.msra.mxu0 0.0
      %512 = vmatprep.subr.mxu0 0.0
      %513 = vmatpush1.msra.mxu0 0.0
      %514 = vmatprep.mubr.f32.mxu0 0.0
      %515 = vmatmul.mubr.f32.gmra.mrb[0].mxu0 %v445
      %v516 = vpop.f32.mrb[0].mxu0
      %v517 = vadd.f32 0.0, %v516
      %v518 = vpop.f32.mrb[0].mxu0
      %519 = vmatprep.mubr.f32.mxu0 0.0
      %520 = vmatmul.mubr.f32.gmra.mrb[0].mxu0 %v448
      %v521 = vpop.f32.mrb[0].mxu0
      %v522 = vadd.f32 0.0, %v521
      %v523 = vpop.f32.mrb[0].mxu0
      %524 = vdwg.mxu0
      %v525 = vadd.f32 %v425, %v517
      %v526 = vadd.f32 %v430, %v522
      %v527 = vld [vmem:[%s2] sm:$0x1]
      %v529 = vlaneseq
      %v530 = vshrl.u32 %v529, 7
      %v531 = vsub.s32 0, %v530
      %v532 = vrot.slane %v527, %v531
      %v534 = vadd.f32 %v525, %v532
      %v535 = vadd.f32 %v526, %v532
      %536 = vst.msk [vmem:[%s235] sm:$0xff] %vm247, %v534
      %537 = vst.msk [vmem:[%s235 + $0x8] sm:$0xff] %vm247, %v535
      %v538 = vsel %vm247, %v534, 0.0
      %v539 = vsel %vm247, %v535, 0.0
      %v540 = vadd.f32 %v538, %v539
      %v541 = vrot.slane %v540, 4
      %v542 = vadd.f32 %v540, %v541
      %v543 = vrot.slane %v542, 2
      %v544 = vadd.f32 %v542, %v543
      %v545 = vrot.slane %v544, 1
      %v546 = vadd.f32 %v544, %v545
      %547 = vst.msk [vmem:[%s238] sm:$0x1] %vm242, %v546
      %v548 = vmul.f32 %v534, %v534
      %v549 = vmul.f32 %v535, %v535
      %v550 = vsel %vm247, %v548, 0.0
      %v551 = vsel %vm247, %v549, 0.0
      %v552 = vadd.f32 %v550, %v551
      %v553 = vrot.slane %v552, 4
      %v554 = vadd.f32 %v552, %v553
      %v555 = vrot.slane %v554, 2
      %v556 = vadd.f32 %v554, %v555
      %v557 = vrot.slane %v556, 1
      %v558 = vadd.f32 %v556, %v557
      %559 = vst.msk [vmem:[%s241] sm:$0x1] %vm242, %v558
      %p560 = scmp.lt.s32.totalorder %s17, 1
      %s561 = scalar_select %p560, %s17, 1
      %s562 = smul.addr %s561, 2
      %s563 = smul.addr %s562, 8
      %s564 = scalar_lea.vmem %s3, %s563
      %p565 = scmp.lt.s32.totalorder %s17, 1
      %s566 = scalar_select %p565, %s17, 1
      %s567 = scalar_lea.vmem %s4, %s566
      %p568 = scmp.lt.s32.totalorder %s17, 1
      %s569 = scalar_select %p568, %s17, 1
      %s570 = scalar_lea.vmem %s5, %s569
      // Predicated region
      $region33: #{residual_block.3} parent=31 // pred_check
        %p571 = pneg %p103
      $region34: #{residual_block.3} parent=31 // pred_check_branch
        %573 = sbr.rel (%p571) target = $region36
      $region35: #{residual_block.3} parent=31 // pred_region
        _
      $region36: #{residual_block.3} parent=31 // pred_fallthru
        _
      // Predicated region
      $region37: #{residual_block.3} parent=31 // pred_check
        %p574 = pneg %p129
      $region38: #{residual_block.3} parent=31 // pred_check_branch
        %576 = sbr.rel (%p574) target = $region40
      $region39: #{residual_block.3} parent=31 // pred_region
        _
      $region40: #{residual_block.3} parent=31 // pred_fallthru
        _
      // Predicated region
      $region41: #{residual_block.3} parent=31 // pred_check
        %p577 = pneg %p155
      $region42: #{residual_block.3} parent=31 // pred_check_branch
        %579 = sbr.rel (%p577) target = $region44
      $region43: #{residual_block.3} parent=31 // pred_region
        _
      $region44: #{residual_block.3} parent=31 // pred_fallthru
        _
    $region32: #{residual_block.3} parent=5 // pred_fallthru
      _
    %p580 = scmp.le.s32.totalorder 2, %s12
    // Predicated region
    $region45: #{residual_block.3} parent=5 // pred_check
      %p581 = pneg %p580
    $region46: #{residual_block.3} parent=5 // pred_check_branch
      %583 = sbr.rel (%p581) target = $region48
    $region47: #{residual_block.3} parent=5 // pred_region
      %s584 = ssub.s32 %s12, 2
      // Predicated region
      $region49: #{residual_block.3} parent=47 // pred_check
        %p585 = pneg %p109
      $region50: #{residual_block.3} parent=47 // pred_check_branch
        %587 = sbr.rel (%p585) target = $region52
      $region51: #{residual_block.3} parent=47 // pred_region
        %p588 = scmp.lt.s32.totalorder %s18, 1
        %s589 = scalar_select %p588, %s18, 1
        %s590 = smul.addr %s589, 2
        %s591 = smul.addr %s590, 8
        %s592 = scalar_lea.vmem %s3, %s591
      $region52: #{residual_block.3} parent=47 // pred_fallthru
        _
      // Predicated region
      $region53: #{residual_block.3} parent=47 // pred_check
        %p593 = pneg %p135
      $region54: #{residual_block.3} parent=47 // pred_check_branch
        %595 = sbr.rel (%p593) target = $region56
      $region55: #{residual_block.3} parent=47 // pred_region
        %p596 = scmp.lt.s32.totalorder %s18, 1
        %s597 = scalar_select %p596, %s18, 1
        %s598 = scalar_lea.vmem %s4, %s597
      $region56: #{residual_block.3} parent=47 // pred_fallthru
        _
      // Predicated region
      $region57: #{residual_block.3} parent=47 // pred_check
        %p599 = pneg %p161
      $region58: #{residual_block.3} parent=47 // pred_check_branch
        %601 = sbr.rel (%p599) target = $region60
      $region59: #{residual_block.3} parent=47 // pred_region
        %p602 = scmp.lt.s32.totalorder %s18, 1
        %s603 = scalar_select %p602, %s18, 1
        %s604 = scalar_lea.vmem %s5, %s603
      $region60: #{residual_block.3} parent=47 // pred_fallthru
        _
    $region48: #{residual_block.3} parent=5 // pred_fallthru
      _
  $region6: #{residual_block.3} parent=0 // loop_footer
    %s16 = sadd.s32 1, %s12
  $region7: #{residual_block.3} parent=0 // loop_footer_branch
    %11 = sbr.rel target = $region3
  $region8: #{residual_block.3} parent=0 // loop_exit
    _

// kernel: residual_block.4
$region0: #{residual_block.4}
  #allocation0 [shape = 'u32[]', space=smem, size = 0x4, offset = 0x4, fixed_abs, tag = 'smem constant byte address 0x4 - core index']
  #allocation1 [shape = 'u32[144,128]{1,0:T(1,128)}', space=vmem, size = 0x12000, scoped, tag = 'internal scratch']
  #allocation2 [shape = 'f32[18,64]{1,0:T(8,128)}', space=vmem, size = 0x3000, scoped, tag = 'scratch operand']
  %s0 = inlined_call_operand.vmem [shape: f32[2,16,64], index: 0, kind: input, shape index: {}]
  %s1 = inlined_call_operand.vmem [shape: f32[1,64], index: 1, kind: input, shape index: {}]
  %s2 = inlined_call_operand.vmem [shape: f32[1,64], index: 2, kind: input, shape index: {}]
  %s3 = inlined_call_operand.vmem [shape: f32[3,64,64], index: 3, kind: input, shape index: {}]
  %s4 = inlined_call_operand.vmem [shape: f32[1,64], index: 4, kind: input, shape index: {}]
  %s5 = inlined_call_operand.vmem [shape: f32[2,16,64], index: 5, kind: output, shape index: {0}]
  %s6 = inlined_call_operand.vmem [shape: f32[2,1,64], index: 6, kind: output, shape index: {1}]
  %s7 = inlined_call_operand.vmem [shape: f32[2,1,64], index: 7, kind: output, shape index: {2}]
  %8 = xla_tuple %s5, %s6, %s7
  %s9 = sld [smem:[#allocation0]]
  $region69: #{residual_block.4} parent=0
    _
  %s11 = ssub.s32 1, %s9
  %s12 = scalar_select 0, %s11, %s9
  loop: start=0, step=1, limit=4
  $region2: #{residual_block.4} parent=0 // loop_pre_header
    _
  $region3: #{residual_block.4} parent=0 // loop_header
    %s14 = sphi 0, %s18
    %p15 = scmp.ge.s32.totalorder %s14, 4
    %s24 = sphi 0, %s26
    %s27 = sphi 0, %s24
    %s28 = sphi 0, %s27
    %s44 = sphi 0, %s28
    %s48 = sphi 0, %s48
    %s50 = sphi 0, %s48
    %s51 = sphi 0, %s50
    %s65 = sphi 0, %s51
    %s69 = sphi 0, %s69
    %s71 = sphi 0, %s69
    %s72 = sphi 0, %s71
    %s86 = sphi 0, %s72
    %s90 = sphi 0, %s90
    %s92 = sphi 0, %s90
    %s93 = sphi 0, %s92
    %s107 = sphi 0, %s93
    %s111 = sphi 0, %s111
    %s113 = sphi 0, %s111
    %s114 = sphi 0, %s113
    %s128 = sphi 0, %s114
    %s134 = sphi 0, %s136
    %s137 = sphi 0, %s134
    %s138 = sphi 0, %s137
    %s154 = sphi 0, %s138
    %s160 = sphi 0, %s162
    %s163 = sphi 0, %s160
    %s164 = sphi 0, %s163
    %s180 = sphi 0, %s164
    %s186 = sphi 0, %s188
    %s189 = sphi 0, %s186
    %s190 = sphi 0, %s189
    %s206 = sphi 0, %s190
  $region4: #{residual_block.4} parent=0 // loop_header_branch
    %17 = sbr.rel (%p15) target = $region8
  $region5: #{residual_block.4} parent=0 // loop_body
    %s19 = ssub.s32 %s14, 1
    %s20 = ssub.s32 %s14, 2
    %s21 = sadd.s32 %s14, 1
    %s22 = ssub.s32 %s14, %s21
    %p23 = scmp.eq.s32.totalorder %s22, 0
    %s25 = sadd.s32 %s24, 1
    %s26 = scalar_select %p23, %s24, %s25
    %p29 = pneg %p23
    %p30 = scmp.eq.s32.totalorder %s14, 1
    %p31 = por %p29, %p30
    %p32 = scmp.ne.s32.totalorder %s24, %s27
    %p33 = scmp.eq.s32.totalorder %s14, 0
    %p34 = por %p32, %p33
    %p35 = scmp.ne.s32.totalorder %s24, %s27
    %p36 = scmp.eq.s32.totalorder %s19, 1
    %p37 = por %p35, %p36
    %p38 = scmp.ne.s32.totalorder %s27, %s28
    %p39 = scmp.eq.s32.totalorder %s19, 0
    %p40 = por %p38, %p39
    %p41 = scmp.ne.s32.totalorder %s27, %s28
    %p42 = scmp.eq.s32.totalorder %s20, 1
    %p43 = por %p41, %p42
    %p45 = scmp.ne.s32.totalorder %s28, %s44
    %p46 = scmp.eq.s32.totalorder %s20, 0
    %p47 = por %p45, %p46
    %s49 = sadd.s32 %s48, 1
    %p52 = scmp.eq.s32.totalorder %s14, 1
    %p53 = scmp.ne.s32.totalorder %s48, %s50
    %p54 = scmp.eq.s32.totalorder %s14, 0
    %p55 = por %p53, %p54
    %p56 = scmp.ne.s32.totalorder %s48, %s50
    %p57 = scmp.eq.s32.totalorder %s19, 1
    %p58 = por %p56, %p57
    %p59 = scmp.ne.s32.totalorder %s50, %s51
    %p60 = scmp.eq.s32.totalorder %s19, 0
    %p61 = por %p59, %p60
    %p62 = scmp.ne.s32.totalorder %s50, %s51
    %p63 = scmp.eq.s32.totalorder %s20, 1
    %p64 = por %p62, %p63
    %p66 = scmp.ne.s32.totalorder %s51, %s65
    %p67 = scmp.eq.s32.totalorder %s20, 0
    %p68 = por %p66, %p67
    %s70 = sadd.s32 %s69, 1
    %p73 = scmp.eq.s32.totalorder %s14, 1
    %p74 = scmp.ne.s32.totalorder %s69, %s71
    %p75 = scmp.eq.s32.totalorder %s14, 0
    %p76 = por %p74, %p75
    %p77 = scmp.ne.s32.totalorder %s69, %s71
    %p78 = scmp.eq.s32.totalorder %s19, 1
    %p79 = por %p77, %p78
    %p80 = scmp.ne.s32.totalorder %s71, %s72
    %p81 = scmp.eq.s32.totalorder %s19, 0
    %p82 = por %p80, %p81
    %p83 = scmp.ne.s32.totalorder %s71, %s72
    %p84 = scmp.eq.s32.totalorder %s20, 1
    %p85 = por %p83, %p84
    %p87 = scmp.ne.s32.totalorder %s72, %s86
    %p88 = scmp.eq.s32.totalorder %s20, 0
    %p89 = por %p87, %p88
    %s91 = sadd.s32 %s90, 1
    %p94 = scmp.eq.s32.totalorder %s14, 1
    %p95 = scmp.ne.s32.totalorder %s90, %s92
    %p96 = scmp.eq.s32.totalorder %s14, 0
    %p97 = por %p95, %p96
    %p98 = scmp.ne.s32.totalorder %s90, %s92
    %p99 = scmp.eq.s32.totalorder %s19, 1
    %p100 = por %p98, %p99
    %p101 = scmp.ne.s32.totalorder %s92, %s93
    %p102 = scmp.eq.s32.totalorder %s19, 0
    %p103 = por %p101, %p102
    %p104 = scmp.ne.s32.totalorder %s92, %s93
    %p105 = scmp.eq.s32.totalorder %s20, 1
    %p106 = por %p104, %p105
    %p108 = scmp.ne.s32.totalorder %s93, %s107
    %p109 = scmp.eq.s32.totalorder %s20, 0
    %p110 = por %p108, %p109
    %s112 = sadd.s32 %s111, 1
    %p115 = scmp.eq.s32.totalorder %s14, 1
    %p116 = scmp.ne.s32.totalorder %s111, %s113
    %p117 = scmp.eq.s32.totalorder %s14, 0
    %p118 = por %p116, %p117
    %p119 = scmp.ne.s32.totalorder %s111, %s113
    %p120 = scmp.eq.s32.totalorder %s19, 1
    %p121 = por %p119, %p120
    %p122 = scmp.ne.s32.totalorder %s113, %s114
    %p123 = scmp.eq.s32.totalorder %s19, 0
    %p124 = por %p122, %p123
    %p125 = scmp.ne.s32.totalorder %s113, %s114
    %p126 = scmp.eq.s32.totalorder %s20, 1
    %p127 = por %p125, %p126
    %p129 = scmp.ne.s32.totalorder %s114, %s128
    %p130 = scmp.eq.s32.totalorder %s20, 0
    %p131 = por %p129, %p130
    %s132 = ssub.s32 %s14, %s21
    %p133 = scmp.eq.s32.totalorder %s132, 0
    %s135 = sadd.s32 %s134, 1
    %s136 = scalar_select %p133, %s134, %s135
    %p139 = pneg %p133
    %p140 = scmp.eq.s32.totalorder %s14, 1
    %p141 = por %p139, %p140
    %p142 = scmp.ne.s32.totalorder %s134, %s137
    %p143 = scmp.eq.s32.totalorder %s14, 0
    %p144 = por %p142, %p143
    %p145 = scmp.ne.s32.totalorder %s134, %s137
    %p146 = scmp.eq.s32.totalorder %s19, 1
    %p147 = por %p145, %p146
    %p148 = scmp.ne.s32.totalorder %s137, %s138
    %p149 = scmp.eq.s32.totalorder %s19, 0
    %p150 = por %p148, %p149
    %p151 = scmp.ne.s32.totalorder %s137, %s138
    %p152 = scmp.eq.s32.totalorder %s20, 1
    %p153 = por %p151, %p152
    %p155 = scmp.ne.s32.totalorder %s138, %s154
    %p156 = scmp.eq.s32.totalorder %s20, 0
    %p157 = por %p155, %p156
    %s158 = ssub.s32 %s14, %s21
    %p159 = scmp.eq.s32.totalorder %s158, 0
    %s161 = sadd.s32 %s160, 1
    %s162 = scalar_select %p159, %s160, %s161
    %p165 = pneg %p159
    %p166 = scmp.eq.s32.totalorder %s14, 1
    %p167 = por %p165, %p166
    %p168 = scmp.ne.s32.totalorder %s160, %s163
    %p169 = scmp.eq.s32.totalorder %s14, 0
    %p170 = por %p168, %p169
    %p171 = scmp.ne.s32.totalorder %s160, %s163
    %p172 = scmp.eq.s32.totalorder %s19, 1
    %p173 = por %p171, %p172
    %p174 = scmp.ne.s32.totalorder %s163, %s164
    %p175 = scmp.eq.s32.totalorder %s19, 0
    %p176 = por %p174, %p175
    %p177 = scmp.ne.s32.totalorder %s163, %s164
    %p178 = scmp.eq.s32.totalorder %s20, 1
    %p179 = por %p177, %p178
    %p181 = scmp.ne.s32.totalorder %s164, %s180
    %p182 = scmp.eq.s32.totalorder %s20, 0
    %p183 = por %p181, %p182
    %s184 = ssub.s32 %s14, %s21
    %p185 = scmp.eq.s32.totalorder %s184, 0
    %s187 = sadd.s32 %s186, 1
    %s188 = scalar_select %p185, %s186, %s187
    %p191 = pneg %p185
    %p192 = scmp.eq.s32.totalorder %s14, 1
    %p193 = por %p191, %p192
    %p194 = scmp.ne.s32.totalorder %s186, %s189
    %p195 = scmp.eq.s32.totalorder %s14, 0
    %p196 = por %p194, %p195
    %p197 = scmp.ne.s32.totalorder %s186, %s189
    %p198 = scmp.eq.s32.totalorder %s19, 1
    %p199 = por %p197, %p198
    %p200 = scmp.ne.s32.totalorder %s189, %s190
    %p201 = scmp.eq.s32.totalorder %s19, 0
    %p202 = por %p200, %p201
    %p203 = scmp.ne.s32.totalorder %s189, %s190
    %p204 = scmp.eq.s32.totalorder %s20, 1
    %p205 = por %p203, %p204
    %p207 = scmp.ne.s32.totalorder %s190, %s206
    %p208 = scmp.eq.s32.totalorder %s20, 0
    %p209 = por %p207, %p208
    %p210 = scmp.le.s32.totalorder 1, %s14
    %p211 = scmp.lt.s32.totalorder %s14, 3
    %p212 = pnand %p210, %p211
    %p213 = pneg %p212
    // Predicated region
    $region9: #{residual_block.4} parent=5 // pred_check
      _
    $region10: #{residual_block.4} parent=5 // pred_check_branch
      %215 = sbr.rel (%p212) target = $region12
    $region11: #{residual_block.4} parent=5 // pred_region
      %s216 = ssub.s32 %s14, 1
      // Predicated region
      $region13: #{residual_block.4} parent=11 // pred_check
        %p217 = pneg %p61
      $region14: #{residual_block.4} parent=11 // pred_check_branch
        %219 = sbr.rel (%p217) target = $region16
      $region15: #{residual_block.4} parent=11 // pred_region
        _
      $region16: #{residual_block.4} parent=11 // pred_fallthru
        _
      // Predicated region
      $region17: #{residual_block.4} parent=11 // pred_check
        %p220 = pneg %p82
      $region18: #{residual_block.4} parent=11 // pred_check_branch
        %222 = sbr.rel (%p220) target = $region20
      $region19: #{residual_block.4} parent=11 // pred_region
        _
      $region20: #{residual_block.4} parent=11 // pred_fallthru
        _
      // Predicated region
      $region21: #{residual_block.4} parent=11 // pred_check
        %p223 = pneg %p103
      $region22: #{residual_block.4} parent=11 // pred_check_branch
        %225 = sbr.rel (%p223) target = $region24
      $region23: #{residual_block.4} parent=11 // pred_region
        _
      $region24: #{residual_block.4} parent=11 // pred_fallthru
        _
      // Predicated region
      $region25: #{residual_block.4} parent=11 // pred_check
        %p226 = pneg %p124
      $region26: #{residual_block.4} parent=11 // pred_check_branch
        %228 = sbr.rel (%p226) target = $region28
      $region27: #{residual_block.4} parent=11 // pred_region
        _
      $region28: #{residual_block.4} parent=11 // pred_fallthru
        _
    $region12: #{residual_block.4} parent=5 // pred_fallthru
      _
    %p229 = scmp.lt.s32.totalorder %s14, 2
    // Predicated region
    $region29: #{residual_block.4} parent=5 // pred_check
      %p230 = pneg %p229
    $region30: #{residual_block.4} parent=5 // pred_check_branch
      %232 = sbr.rel (%p230) target = $region32
    $region31: #{residual_block.4} parent=5 // pred_region
      // Predicated region
      $region33: #{residual_block.4} parent=31 // pred_check
        %p233 = pneg %p34
      $region34: #{residual_block.4} parent=31 // pred_check_branch
        %235 = sbr.rel (%p233) target = $region36
      $region35: #{residual_block.4} parent=31 // pred_region
        %p236 = scmp.lt.s32.totalorder %s14, 1
        %s237 = scalar_select %p236, %s14, 1
        %s238 = smul.addr %s237, 2
        %s239 = smul.addr %s238, 8
        %s240 = scalar_lea.vmem %s0, %s239
      $region36: #{residual_block.4} parent=31 // pred_fallthru
        _
    $region32: #{residual_block.4} parent=5 // pred_fallthru
      _
    %p241 = scmp.le.s32.totalorder 1, %s14
    %p242 = scmp.lt.s32.totalorder %s14, 3
    %p243 = pnand %p241, %p242
    %p244 = pneg %p243
    // Predicated region
    $region37: #{residual_block.4} parent=5 // pred_check
      _
    $region38: #{residual_block.4} parent=5 // pred_check_branch
      %246 = sbr.rel (%p243) target = $region40
    $region39: #{residual_block.4} parent=5 // pred_region
      %s247 = ssub.s32 %s14, 1
      %p248 = scmp.lt.s32.totalorder %s19, 1
      %s249 = scalar_select %p248, %s19, 1
      %s250 = smul.addr %s249, 2
      %s251 = smul.addr %s250, 8
      %s252 = scalar_lea.vmem %s0, %s251
      %p253 = pneg %p40
      %p254 = pneg %p37
      %p255 = pneg %p61
      %p256 = pneg %p58
      %p257 = pneg %p82
      %p258 = pneg %p79
      %p259 = pneg %p103
      %p260 = pneg %p100
      %p261 = pneg %p124
      %p262 = pneg %p121
      %p263 = pneg %p150
      %p264 = pneg %p147
      %p265 = scmp.lt.s32.totalorder %s19, 1
      %s266 = scalar_select %p265, %s19, 1
      %s267 = smul.addr %s266, 2
      %s268 = smul.addr %s267, 8
      %s269 = scalar_lea.vmem %s5, %s268
      %p270 = pneg %p176
      %p271 = pneg %p173
      %p272 = scmp.lt.s32.totalorder %s19, 1
      %s273 = scalar_select %p272, %s19, 1
      %s274 = scalar_lea.vmem %s6, %s273
      %p275 = pneg %p202
      %p276 = pneg %p199
      %p277 = scmp.lt.s32.totalorder %s19, 1
      %s278 = scalar_select %p277, %s19, 1
      %s279 = scalar_lea.vmem %s7, %s278
      %p280 = scmp.lt.s32.totalorder %s19, 1
      %s281 = scalar_select %p280, %s19, 1
      %s282 = smul.addr %s281, 2
      %s283 = smul.addr %s282, 8
      %s284 = scalar_lea.vmem %s0, %s283
      %p285 = scmp.lt.s32.totalorder %s19, 1
      %s286 = scalar_select %p285, %s19, 1
      %s287 = smul.addr %s286, 2
      %s288 = smul.addr %s287, 8
      %s289 = scalar_lea.vmem %s5, %s288
      %p290 = scmp.lt.s32.totalorder %s19, 1
      %s291 = scalar_select %p290, %s19, 1
      %s292 = scalar_lea.vmem %s6, %s291
      %p293 = scmp.lt.s32.totalorder %s19, 1
      %s294 = scalar_select %p293, %s19, 1
      %s295 = scalar_lea.vmem %s7, %s294
      %v296 = vld [vmem:[%s284] sm:$0xff]
      %v297 = vld [vmem:[%s284 + $0x8] sm:$0xff]
      %v298 = vld [vmem:[%s1] sm:$0x1]
      %v300 = vlaneseq
      %v301 = vshrl.u32 %v300, 7
      %v302 = vsub.s32 0, %v301
      %v303 = vrot.slane %v298, %v302
      %v305 = vmul.f32 %v296, %v303
      %v306 = vmul.f32 %v297, %v303
      %v307 = vld [vmem:[%s2] sm:$0x1]
      %v309 = vlaneseq
      %v310 = vshrl.u32 %v309, 7
      %v311 = vsub.s32 0, %v310
      %v312 = vrot.slane %v307, %v311
      %v314 = vadd.f32 %v305, %v312
      %v315 = vadd.f32 %v306, %v312
      %v316 = vmax.f32 %v314, 0.0
      %v317 = vmax.f32 %v315, 0.0
      %vm318 = vcmask 516096
      %319 = vst.msk [vmem:[#allocation2] sm:$0x1] %vm318, 0.0
      %320 = vst.msk [vmem:[#allocation2 + $0x11] sm:$0x1] %vm318, 0.0
      %vm321 = vcmask 523264
      %322 = vst.msk [vmem:[#allocation2 + $0x1] sm:$0xff] %vm321, %v316
      %323 = vst.msk [vmem:[#allocation2 + $0x9] sm:$0xff] %vm321, %v317
      %v324 = vld [vmem:[#allocation2] sm:$0xff]
      %v325 = vld [vmem:[#allocation2 + $0x8] sm:$0xff]
      %v326 = vld [vmem:[%s3] sm:$0xff]
      %v327 = vld [vmem:[%s3 + $0x8] sm:$0xff]
      %v328 = vld [vmem:[%s3 + $0x10] sm:$0xff]
      %v329 = vld [vmem:[%s3 + $0x18] sm:$0xff]
      %v330 = vld [vmem:[%s3 + $0x20] sm:$0xff]
      %v331 = vld [vmem:[%s3 + $0x28] sm:$0xff]
      %v332 = vld [vmem:[%s3 + $0x30] sm:$0xff]
      %v333 = vld [vmem:[%s3 + $0x38] sm:$0xff]
      %v334 = vld [vmem:[#allocation2 + $0x1] sm:$0xff]
      %v335 = vld [vmem:[#allocation2 + $0x9] sm:$0xff]
      %s336 = scalar_lea.vmem %s3, 64
      %v337 = vld [vmem:[%s336] sm:$0xff]
      %v338 = vld [vmem:[%s336 + $0x8] sm:$0xff]
      %v339 = vld [vmem:[%s336 + $0x10] sm:$0xff]
      %v340 = vld [vmem:[%s336 + $0x18] sm:$0xff]
      %v341 = vld [vmem:[%s336 + $0x20] sm:$0xff]
      %v342 = vld [vmem:[%s336 + $0x28] sm:$0xff]
      %v343 = vld [vmem:[%s336 + $0x30] sm:$0xff]
      %v344 = vld [vmem:[%s336 + $0x38] sm:$0xff]
      %v346 = vsel %vm321, %v334, 0
      %v349 = vsel %vm321, %v335, 0
      %351 = vmatprep.subr.mxu0 0.0
      %352 = vmatpush1.msra.mxu0 %v337
      %353 = vmatprep.subr.mxu0 0.0
      %354 = vmatpush1.msra.mxu0 %v338
      %355 = vmatprep.subr.mxu0 0.0
      %356 = vmatpush1.msra.mxu0 %v339
      %357 = vmatprep.subr.mxu0 0.0
      %358 = vmatpush1.msra.mxu0 %v340
      %359 = vmatprep.subr.mxu0 0.0
      %360 = vmatpush1.msra.mxu0 %v341
      %361 = vmatprep.subr.mxu0 0.0
      %362 = vmatpush1.msra.mxu0 %v342
      %363 = vmatprep.subr.mxu0 0.0
      %364 = vmatpush1.msra.mxu0 %v343
      %365 = vmatprep.subr.mxu0 0.0
      %366 = vmatpush1.msra.mxu0 %v344
      %367 = vmatprep.subr.mxu0 0.0
      %368 = vmatpush1.msra.mxu0 0.0
      %369 = vmatprep.subr.mxu0 0.0
      %370 = vmatpush1.msra.mxu0 0.0
      %371 = vmatprep.subr.mxu0 0.0
      %372 = vmatpush1.msra.mxu0 0.0
      %373 = vmatprep.subr.mxu0 0.0
      %374 = vmatpush1.msra.mxu0 0.0
      %375 = vmatprep.subr.mxu0 0.0
      %376 = vmatpush1.msra.mxu0 0.0
      %377 = vmatprep.subr.mxu0 0.0
      %378 = vmatpush1.msra.mxu0 0.0
      %379 = vmatprep.subr.mxu0 0.0
      %380 = vmatpush1.msra.mxu0 0.0
      %381 = vmatprep.subr.mxu0 0.0
      %382 = vmatpush1.msra.mxu0 0.0
      %383 = vmatprep.subr.mxu0 0.0
      %384 = vmatpush1.msra.mxu0 0.0
      %385 = vmatprep.subr.mxu0 0.0
      %386 = vmatpush1.msra.mxu0 0.0
      %387 = vmatprep.subr.mxu0 0.0
      %388 = vmatpush1.msra.mxu0 0.0
      %389 = vmatprep.subr.mxu0 0.0
      %390 = vmatpush1.msra.mxu0 0.0
      %391 = vmatprep.subr.mxu0 0.0
      %392 = vmatpush1.msra.mxu0 0.0
      %393 = vmatprep.subr.mxu0 0.0
      %394 = vmatpush1.msra.mxu0 0.0
      %395 = vmatprep.subr.mxu0 0.0
      %396 = vmatpush1.msra.mxu0 0.0
      %397 = vmatprep.subr.mxu0 0.0
      %398 = vmatpush1.msra.mxu0 0.0
      %399 = vmatprep.subr.mxu0 0.0
      %400 = vmatpush1.msra.mxu0 0.0
      %401 = vmatprep.subr.mxu0 0.0
      %402 = vmatpush1.msra.mxu0 0.0
      %403 = vmatprep.subr.mxu0 0.0
      %404 = vmatpush1.msra.mxu0 0.0
      %405 = vmatprep.subr.mxu0 0.0
      %406 = vmatpush1.msra.mxu0 0.0
      %407 = vmatprep.subr.mxu0 0.0
      %408 = vmatpush1.msra.mxu0 0.0
      %409 = vmatprep.subr.mxu0 0.0
      %410 = vmatpush1.msra.mxu0 0.0
      %411 = vmatprep.subr.mxu0 0.0
      %412 = vmatpush1.msra.mxu0 0.0
      %413 = vmatprep.subr.mxu0 0.0
      %414 = vmatpush1.msra.mxu0 0.0
      %415 = vmatprep.mubr.f32.mxu0 0.0
      %416 = vmatmul.mubr.f32.gmra.mrb[0].mxu0 %v346
      %v417 = vpop.f32.mrb[0].mxu0
      %v418 = vadd.f32 0.0, %v417
      %v419 = vpop.f32.mrb[0].mxu0
      %420 = vmatprep.mubr.f32.mxu0 0.0
      %421 = vmatmul.mubr.f32.gmra.mrb[0].mxu0 %v349
      %v422 = vpop.f32.mrb[0].mxu0
      %v423 = vadd.f32 0.0, %v422
      %v424 = vpop.f32.mrb[0].mxu0
      %425 = vdwg.mxu0
      %v427 = vsel %vm321, %v324, 0
      %v430 = vsel %vm321, %v325, 0
      %432 = vmatprep.subr.mxu0 0.0
      %433 = vmatpush1.msra.mxu0 %v326
      %434 = vmatprep.subr.mxu0 0.0
      %435 = vmatpush1.msra.mxu0 %v327
      %436 = vmatprep.subr.mxu0 0.0
      %437 = vmatpush1.msra.mxu0 %v328
      %438 = vmatprep.subr.mxu0 0.0
      %439 = vmatpush1.msra.mxu0 %v329
      %440 = vmatprep.subr.mxu0 0.0
      %441 = vmatpush1.msra.mxu0 %v330
      %442 = vmatprep.subr.mxu0 0.0
      %443 = vmatpush1.msra.mxu0 %v331
      %444 = vmatprep.subr.mxu0 0.0
      %445 = vmatpush1.msra.mxu0 %v332
      %446 = vmatprep.subr.mxu0 0.0
      %447 = vmatpush1.msra.mxu0 %v333
      %448 = vmatprep.subr.mxu0 0.0
      %449 = vmatpush1.msra.mxu0 0.0
      %450 = vmatprep.subr.mxu0 0.0
      %451 = vmatpush1.msra.mxu0 0.0
      %452 = vmatprep.subr.mxu0 0.0
      %453 = vmatpush1.msra.mxu0 0.0
      %454 = vmatprep.subr.mxu0 0.0
      %455 = vmatpush1.msra.mxu0 0.0
      %456 = vmatprep.subr.mxu0 0.0
      %457 = vmatpush1.msra.mxu0 0.0
      %458 = vmatprep.subr.mxu0 0.0
      %459 = vmatpush1.msra.mxu0 0.0
      %460 = vmatprep.subr.mxu0 0.0
      %461 = vmatpush1.msra.mxu0 0.0
      %462 = vmatprep.subr.mxu0 0.0
      %463 = vmatpush1.msra.mxu0 0.0
      %464 = vmatprep.subr.mxu0 0.0
      %465 = vmatpush1.msra.mxu0 0.0
      %466 = vmatprep.subr.mxu0 0.0
      %467 = vmatpush1.msra.mxu0 0.0
      %468 = vmatprep.subr.mxu0 0.0
      %469 = vmatpush1.msra.mxu0 0.0
      %470 = vmatprep.subr.mxu0 0.0
      %471 = vmatpush1.msra.mxu0 0.0
      %472 = vmatprep.subr.mxu0 0.0
      %473 = vmatpush1.msra.mxu0 0.0
      %474 = vmatprep.subr.mxu0 0.0
      %475 = vmatpush1.msra.mxu0 0.0
      %476 = vmatprep.subr.mxu0 0.0
      %477 = vmatpush1.msra.mxu0 0.0
      %478 = vmatprep.subr.mxu0 0.0
      %479 = vmatpush1.msra.mxu0 0.0
      %480 = vmatprep.subr.mxu0 0.0
      %481 = vmatpush1.msra.mxu0 0.0
      %482 = vmatprep.subr.mxu0 0.0
      %483 = vmatpush1.msra.mxu0 0.0
      %484 = vmatprep.subr.mxu0 0.0
      %485 = vmatpush1.msra.mxu0 0.0
      %486 = vmatprep.subr.mxu0 0.0
      %487 = vmatpush1.msra.mxu0 0.0
      %488 = vmatprep.subr.mxu0 0.0
      %489 = vmatpush1.msra.mxu0 0.0
      %490 = vmatprep.subr.mxu0 0.0
      %491 = vmatpush1.msra.mxu0 0.0
      %492 = vmatprep.subr.mxu0 0.0
      %493 = vmatpush1.msra.mxu0 0.0
      %494 = vmatprep.subr.mxu0 0.0
      %495 = vmatpush1.msra.mxu0 0.0
      %496 = vmatprep.mubr.f32.mxu0 0.0
      %497 = vmatmul.mubr.f32.gmra.mrb[0].mxu0 %v427
      %v498 = vpop.f32.mrb[0].mxu0
      %v499 = vadd.f32 %v418, %v498
      %v500 = vpop.f32.mrb[0].mxu0
      %501 = vmatprep.mubr.f32.mxu0 0.0
      %502 = vmatmul.mubr.f32.gmra.mrb[0].mxu0 %v430
      %v503 = vpop.f32.mrb[0].mxu0
      %v504 = vadd.f32 %v423, %v503
      %v505 = vpop.f32.mrb[0].mxu0
      %506 = vdwg.mxu0
      %v507 = vld [vmem:[#allocation2 + $0x2] sm:$0xff]
      %v508 = vld [vmem:[#allocation2 + $0xa] sm:$0xff]
      %s509 = scalar_lea.vmem %s3, 128
      %v510 = vld [vmem:[%s509] sm:$0xff]
      %v511 = vld [vmem:[%s509 + $0x8] sm:$0xff]
      %v512 = vld [vmem:[%s509 + $0x10] sm:$0xff]
      %v513 = vld [vmem:[%s509 + $0x18] sm:$0xff]
      %v514 = vld [vmem:[%s509 + $0x20] sm:$0xff]
      %v515 = vld [vmem:[%s509 + $0x28] sm:$0xff]
      %v516 = vld [vmem:[%s509 + $0x30] sm:$0xff]
      %v517 = vld [vmem:[%s509 + $0x38] sm:$0xff]
      %v519 = vsel %vm321, %v507, 0
      %v522 = vsel %vm321, %v508, 0
      %524 = vmatprep.subr.mxu0 0.0
      %525 = vmatpush1.msra.mxu0 %v510
      %526 = vmatprep.subr.mxu0 0.0
      %527 = vmatpush1.msra.mxu0 %v511
      %528 = vmatprep.subr.mxu0 0.0
      %529 = vmatpush1.msra.mxu0 %v512
      %530 = vmatprep.subr.mxu0 0.0
      %531 = vmatpush1.msra.mxu0 %v513
      %532 = vmatprep.subr.mxu0 0.0
      %533 = vmatpush1.msra.mxu0 %v514
      %534 = vmatprep.subr.mxu0 0.0
      %535 = vmatpush1.msra.mxu0 %v515
      %536 = vmatprep.subr.mxu0 0.0
      %537 = vmatpush1.msra.mxu0 %v516
      %538 = vmatprep.subr.mxu0 0.0
      %539 = vmatpush1.msra.mxu0 %v517
      %540 = vmatprep.subr.mxu0 0.0
      %541 = vmatpush1.msra.mxu0 0.0
      %542 = vmatprep.subr.mxu0 0.0
      %543 = vmatpush1.msra.mxu0 0.0
      %544 = vmatprep.subr.mxu0 0.0
      %545 = vmatpush1.msra.mxu0 0.0
      %546 = vmatprep.subr.mxu0 0.0
      %547 = vmatpush1.msra.mxu0 0.0
      %548 = vmatprep.subr.mxu0 0.0
      %549 = vmatpush1.msra.mxu0 0.0
      %550 = vmatprep.subr.mxu0 0.0
      %551 = vmatpush1.msra.mxu0 0.0
      %552 = vmatprep.subr.mxu0 0.0
      %553 = vmatpush1.msra.mxu0 0.0
      %554 = vmatprep.subr.mxu0 0.0
      %555 = vmatpush1.msra.mxu0 0.0
      %556 = vmatprep.subr.mxu0 0.0
      %557 = vmatpush1.msra.mxu0 0.0
      %558 = vmatprep.subr.mxu0 0.0
      %559 = vmatpush1.msra.mxu0 0.0
      %560 = vmatprep.subr.mxu0 0.0
      %561 = vmatpush1.msra.mxu0 0.0
      %562 = vmatprep.subr.mxu0 0.0
      %563 = vmatpush1.msra.mxu0 0.0
      %564 = vmatprep.subr.mxu0 0.0
      %565 = vmatpush1.msra.mxu0 0.0
      %566 = vmatprep.subr.mxu0 0.0
      %567 = vmatpush1.msra.mxu0 0.0
      %568 = vmatprep.subr.mxu0 0.0
      %569 = vmatpush1.msra.mxu0 0.0
      %570 = vmatprep.subr.mxu0 0.0
      %571 = vmatpush1.msra.mxu0 0.0
      %572 = vmatprep.subr.mxu0 0.0
      %573 = vmatpush1.msra.mxu0 0.0
      %574 = vmatprep.subr.mxu0 0.0
      %575 = vmatpush1.msra.mxu0 0.0
      %576 = vmatprep.subr.mxu0 0.0
      %577 = vmatpush1.msra.mxu0 0.0
      %578 = vmatprep.subr.mxu0 0.0
      %579 = vmatpush1.msra.mxu0 0.0
      %580 = vmatprep.subr.mxu0 0.0
      %581 = vmatpush1.msra.mxu0 0.0
      %582 = vmatprep.subr.mxu0 0.0
      %583 = vmatpush1.msra.mxu0 0.0
      %584 = vmatprep.subr.mxu0 0.0
      %585 = vmatpush1.msra.mxu0 0.0
      %586 = vmatprep.subr.mxu0 0.0
      %587 = vmatpush1.msra.mxu0 0.0
      %588 = vmatprep.mubr.f32.mxu0 0.0
      %589 = vmatmul.mubr.f32.gmra.mrb[0].mxu0 %v519
      %v590 = vpop.f32.mrb[0].mxu0
      %v591 = vadd.f32 0.0, %v590
      %v592 = vpop.f32.mrb[0].mxu0
      %593 = vmatprep.mubr.f32.mxu0 0.0
      %594 = vmatmul.mubr.f32.gmra.mrb[0].mxu0 %v522
      %v595 = vpop.f32.mrb[0].mxu0
      %v596 = vadd.f32 0.0, %v595
      %v597 = vpop.f32.mrb[0].mxu0
      %598 = vdwg.mxu0
      %v599 = vadd.f32 %v499, %v591
      %v600 = vadd.f32 %v504, %v596
      %v601 = vld [vmem:[%s4] sm:$0x1]
      %v603 = vlaneseq
      %v604 = vshrl.u32 %v603, 7
      %v605 = vsub.s32 0, %v604
      %v606 = vrot.slane %v601, %v605
      %v608 = vadd.f32 %v599, %v606
      %v609 = vadd.f32 %v600, %v606
      %610 = vst.msk [vmem:[%s289] sm:$0xff] %vm321, %v608
      %611 = vst.msk [vmem:[%s289 + $0x8] sm:$0xff] %vm321, %v609
      %v612 = vsel %vm321, %v608, 0.0
      %v613 = vsel %vm321, %v609, 0.0
      %v614 = vadd.f32 %v612, %v613
      %v615 = vrot.slane %v614, 4
      %v616 = vadd.f32 %v614, %v615
      %v617 = vrot.slane %v616, 2
      %v618 = vadd.f32 %v616, %v617
      %v619 = vrot.slane %v618, 1
      %v620 = vadd.f32 %v618, %v619
      %621 = vst.msk [vmem:[%s292] sm:$0x1] %vm318, %v620
      %v622 = vmul.f32 %v608, %v608
      %v623 = vmul.f32 %v609, %v609
      %v624 = vsel %vm321, %v622, 0.0
      %v625 = vsel %vm321, %v623, 0.0
      %v626 = vadd.f32 %v624, %v625
      %v627 = vrot.slane %v626, 4
      %v628 = vadd.f32 %v626, %v627
      %v629 = vrot.slane %v628, 2
      %v630 = vadd.f32 %v628, %v629
      %v631 = vrot.slane %v630, 1
      %v632 = vadd.f32 %v630, %v631
      %633 = vst.msk [vmem:[%s295] sm:$0x1] %vm318, %v632
      %p634 = scmp.lt.s32.totalorder %s19, 1
      %s635 = scalar_select %p634, %s19, 1
      %s636 = smul.addr %s635, 2
      %s637 = smul.addr %s636, 8
      %s638 = scalar_lea.vmem %s5, %s637
      %p639 = scmp.lt.s32.totalorder %s19, 1
      %s640 = scalar_select %p639, %s19, 1
      %s641 = scalar_lea.vmem %s6, %s640
      %p642 = scmp.lt.s32.totalorder %s19, 1
      %s643 = scalar_select %p642, %s19, 1
      %s644 = scalar_lea.vmem %s7, %s643
      // Predicated region
      $region41: #{residual_block.4} parent=39 // pred_check
        %p645 = pneg %p147
      $region42: #{residual_block.4} parent=39 // pred_check_branch
        %647 = sbr.rel (%p645) target = $region44
      $region43: #{residual_block.4} parent=39 // pred_region
        _
      $region44: #{residual_block.4} parent=39 // pred_fallthru
        _
      // Predicated region
      $region45: #{residual_block.4} parent=39 // pred_check
        %p648 = pneg %p173
      $region46: #{residual_block.4} parent=39 // pred_check_branch
        %650 = sbr.rel (%p648) target = $region48
      $region47: #{residual_block.4} parent=39 // pred_region
        _
      $region48: #{residual_block.4} parent=39 // pred_fallthru
        _
      // Predicated region
      $region49: #{residual_block.4} parent=39 // pred_check
        %p651 = pneg %p199
      $region50: #{residual_block.4} parent=39 // pred_check_branch
        %653 = sbr.rel (%p651) target = $region52
      $region51: #{residual_block.4} parent=39 // pred_region
        _
      $region52: #{residual_block.4} parent=39 // pred_fallthru
        _
    $region40: #{residual_block.4} parent=5 // pred_fallthru
      _
    %p654 = scmp.le.s32.totalorder 2, %s14
    // Predicated region
    $region53: #{residual_block.4} parent=5 // pred_check
      %p655 = pneg %p654
    $region54: #{residual_block.4} parent=5 // pred_check_branch
      %657 = sbr.rel (%p655) target = $region56
    $region55: #{residual_block.4} parent=5 // pred_region
      %s658 = ssub.s32 %s14, 2
      // Predicated region
      $region57: #{residual_block.4} parent=55 // pred_check
        %p659 = pneg %p153
      $region58: #{residual_block.4} parent=55 // pred_check_branch
        %661 = sbr.rel (%p659) target = $region60
      $region59: #{residual_block.4} parent=55 // pred_region
        %p662 = scmp.lt.s32.totalorder %s20, 1
        %s663 = scalar_select %p662, %s20, 1
        %s664 = smul.addr %s663, 2
        %s665 = smul.addr %s664, 8
        %s666 = scalar_lea.vmem %s5, %s665
      $region60: #{residual_block.4} parent=55 // pred_fallthru
        _
      // Predicated region
      $region61: #{residual_block.4} parent=55 // pred_check
        %p667 = pneg %p179
      $region62: #{residual_block.4} parent=55 // pred_check_branch
        %669 = sbr.rel (%p667) target = $region64
      $region63: #{residual_block.4} parent=55 // pred_region
        %p670 = scmp.lt.s32.totalorder %s20, 1
        %s671 = scalar_select %p670, %s20, 1
        %s672 = scalar_lea.vmem %s6, %s671
      $region64: #{residual_block.4} parent=55 // pred_fallthru
        _
      // Predicated region
      $region65: #{residual_block.4} parent=55 // pred_check
        %p673 = pneg %p205
      $region66: #{residual_block.4} parent=55 // pred_check_branch
        %675 = sbr.rel (%p673) target = $region68
      $region67: #{residual_block.4} parent=55 // pred_region
        %p676 = scmp.lt.s32.totalorder %s20, 1
        %s677 = scalar_select %p676, %s20, 1
        %s678 = scalar_lea.vmem %s7, %s677
      $region68: #{residual_block.4} parent=55 // pred_fallthru
        _
    $region56: #{residual_block.4} parent=5 // pred_fallthru
      _
  $region6: #{residual_block.4} parent=0 // loop_footer
    %s18 = sadd.s32 1, %s14
  $region7: #{residual_block.4} parent=0 // loop_footer_branch
    %13 = sbr.rel target = $region3
  $region8: #{residual_block.4} parent=0 // loop_exit
    _

// kernel: residual_block.5
$region0: #{residual_block.5}
  #allocation0 [shape = 'u32[]', space=smem, size = 0x4, offset = 0x4, fixed_abs, tag = 'smem constant byte address 0x4 - core index']
  #allocation1 [shape = 'u32[144,128]{1,0:T(1,128)}', space=vmem, size = 0x12000, scoped, tag = 'internal scratch']
  %s0 = inlined_call_operand.vmem [shape: f32[2,16,64], index: 0, kind: input, shape index: {}]
  %s1 = inlined_call_operand.vmem [shape: f32[2,16,64], index: 1, kind: input, shape index: {}]
  %s2 = inlined_call_operand.vmem [shape: f32[1,64], index: 2, kind: input, shape index: {}]
  %s3 = inlined_call_operand.vmem [shape: f32[1,64], index: 3, kind: input, shape index: {}]
  %s4 = inlined_call_operand.vmem [shape: f32[2,16,64], index: 4, kind: output, shape index: {}]
  %s5 = sld [smem:[#allocation0]]
  $region49: #{residual_block.5} parent=0
    _
  %s7 = ssub.s32 1, %s5
  %s8 = scalar_select 0, %s7, %s5
  loop: start=0, step=1, limit=4
  $region2: #{residual_block.5} parent=0 // loop_pre_header
    _
  $region3: #{residual_block.5} parent=0 // loop_header
    %s10 = sphi 0, %s14
    %p11 = scmp.ge.s32.totalorder %s10, 4
    %s20 = sphi 0, %s22
    %s23 = sphi 0, %s20
    %s24 = sphi 0, %s23
    %s40 = sphi 0, %s24
    %s46 = sphi 0, %s48
    %s49 = sphi 0, %s46
    %s50 = sphi 0, %s49
    %s66 = sphi 0, %s50
    %s70 = sphi 0, %s70
    %s72 = sphi 0, %s70
    %s73 = sphi 0, %s72
    %s87 = sphi 0, %s73
    %s91 = sphi 0, %s91
    %s93 = sphi 0, %s91
    %s94 = sphi 0, %s93
    %s108 = sphi 0, %s94
    %s114 = sphi 0, %s116
    %s117 = sphi 0, %s114
    %s118 = sphi 0, %s117
    %s134 = sphi 0, %s118
  $region4: #{residual_block.5} parent=0 // loop_header_branch
    %13 = sbr.rel (%p11) target = $region8
  $region5: #{residual_block.5} parent=0 // loop_body
    %s15 = ssub.s32 %s10, 1
    %s16 = ssub.s32 %s10, 2
    %s17 = sadd.s32 %s10, 1
    %s18 = ssub.s32 %s10, %s17
    %p19 = scmp.eq.s32.totalorder %s18, 0
    %s21 = sadd.s32 %s20, 1
    %s22 = scalar_select %p19, %s20, %s21
    %p25 = pneg %p19
    %p26 = scmp.eq.s32.totalorder %s10, 1
    %p27 = por %p25, %p26
    %p28 = scmp.ne.s32.totalorder %s20, %s23
    %p29 = scmp.eq.s32.totalorder %s10, 0
    %p30 = por %p28, %p29
    %p31 = scmp.ne.s32.totalorder %s20, %s23
    %p32 = scmp.eq.s32.totalorder %s15, 1
    %p33 = por %p31, %p32
    %p34 = scmp.ne.s32.totalorder %s23, %s24
    %p35 = scmp.eq.s32.totalorder %s15, 0
    %p36 = por %p34, %p35
    %p37 = scmp.ne.s32.totalorder %s23, %s24
    %p38 = scmp.eq.s32.totalorder %s16, 1
    %p39 = por %p37, %p38
    %p41 = scmp.ne.s32.totalorder %s24, %s40
    %p42 = scmp.eq.s32.totalorder %s16, 0
    %p43 = por %p41, %p42
    %s44 = ssub.s32 %s10, %s17
    %p45 = scmp.eq.s32.totalorder %s44, 0
    %s47 = sadd.s32 %s46, 1
    %s48 = scalar_select %p45, %s46, %s47
    %p51 = pneg %p45
    %p52 = scmp.eq.s32.totalorder %s10, 1
    %p53 = por %p51, %p52
    %p54 = scmp.ne.s32.totalorder %s46, %s49
    %p55 = scmp.eq.s32.totalorder %s10, 0
    %p56 = por %p54, %p55
    %p57 = scmp.ne.s32.totalorder %s46, %s49
    %p58 = scmp.eq.s32.totalorder %s15, 1
    %p59 = por %p57, %p58
    %p60 = scmp.ne.s32.totalorder %s49, %s50
    %p61 = scmp.eq.s32.totalorder %s15, 0
    %p62 = por %p60, %p61
    %p63 = scmp.ne.s32.totalorder %s49, %s50
    %p64 = scmp.eq.s32.totalorder %s16, 1
    %p65 = por %p63, %p64
    %p67 = scmp.ne.s32.totalorder %s50, %s66
    %p68 = scmp.eq.s32.totalorder %s16, 0
    %p69 = por %p67, %p68
    %s71 = sadd.s32 %s70, 1
    %p74 = scmp.eq.s32.totalorder %s10, 1
    %p75 = scmp.ne.s32.totalorder %s70, %s72
    %p76 = scmp.eq.s32.totalorder %s10, 0
    %p77 = por %p75, %p76
    %p78 = scmp.ne.s32.totalorder %s70, %s72
    %p79 = scmp.eq.s32.totalorder %s15, 1
    %p80 = por %p78, %p79
    %p81 = scmp.ne.s32.totalorder %s72, %s73
    %p82 = scmp.eq.s32.totalorder %s15, 0
    %p83 = por %p81, %p82
    %p84 = scmp.ne.s32.totalorder %s72, %s73
    %p85 = scmp.eq.s32.totalorder %s16, 1
    %p86 = por %p84, %p85
    %p88 = scmp.ne.s32.totalorder %s73, %s87
    %p89 = scmp.eq.s32.totalorder %s16, 0
    %p90 = por %p88, %p89
    %s92 = sadd.s32 %s91, 1
    %p95 = scmp.eq.s32.totalorder %s10, 1
    %p96 = scmp.ne.s32.totalorder %s91, %s93
    %p97 = scmp.eq.s32.totalorder %s10, 0
    %p98 = por %p96, %p97
    %p99 = scmp.ne.s32.totalorder %s91, %s93
    %p100 = scmp.eq.s32.totalorder %s15, 1
    %p101 = por %p99, %p100
    %p102 = scmp.ne.s32.totalorder %s93, %s94
    %p103 = scmp.eq.s32.totalorder %s15, 0
    %p104 = por %p102, %p103
    %p105 = scmp.ne.s32.totalorder %s93, %s94
    %p106 = scmp.eq.s32.totalorder %s16, 1
    %p107 = por %p105, %p106
    %p109 = scmp.ne.s32.totalorder %s94, %s108
    %p110 = scmp.eq.s32.totalorder %s16, 0
    %p111 = por %p109, %p110
    %s112 = ssub.s32 %s10, %s17
    %p113 = scmp.eq.s32.totalorder %s112, 0
    %s115 = sadd.s32 %s114, 1
    %s116 = scalar_select %p113, %s114, %s115
    %p119 = pneg %p113
    %p120 = scmp.eq.s32.totalorder %s10, 1
    %p121 = por %p119, %p120
    %p122 = scmp.ne.s32.totalorder %s114, %s117
    %p123 = scmp.eq.s32.totalorder %s10, 0
    %p124 = por %p122, %p123
    %p125 = scmp.ne.s32.totalorder %s114, %s117
    %p126 = scmp.eq.s32.totalorder %s15, 1
    %p127 = por %p125, %p126
    %p128 = scmp.ne.s32.totalorder %s117, %s118
    %p129 = scmp.eq.s32.totalorder %s15, 0
    %p130 = por %p128, %p129
    %p131 = scmp.ne.s32.totalorder %s117, %s118
    %p132 = scmp.eq.s32.totalorder %s16, 1
    %p133 = por %p131, %p132
    %p135 = scmp.ne.s32.totalorder %s118, %s134
    %p136 = scmp.eq.s32.totalorder %s16, 0
    %p137 = por %p135, %p136
    %p138 = scmp.le.s32.totalorder 1, %s10
    %p139 = scmp.lt.s32.totalorder %s10, 3
    %p140 = pnand %p138, %p139
    %p141 = pneg %p140
    // Predicated region
    $region9: #{residual_block.5} parent=5 // pred_check
      _
    $region10: #{residual_block.5} parent=5 // pred_check_branch
      %143 = sbr.rel (%p140) target = $region12
    $region11: #{residual_block.5} parent=5 // pred_region
      %s144 = ssub.s32 %s10, 1
      // Predicated region
      $region13: #{residual_block.5} parent=11 // pred_check
        %p145 = pneg %p83
      $region14: #{residual_block.5} parent=11 // pred_check_branch
        %147 = sbr.rel (%p145) target = $region16
      $region15: #{residual_block.5} parent=11 // pred_region
        _
      $region16: #{residual_block.5} parent=11 // pred_fallthru
        _
      // Predicated region
      $region17: #{residual_block.5} parent=11 // pred_check
        %p148 = pneg %p104
      $region18: #{residual_block.5} parent=11 // pred_check_branch
        %150 = sbr.rel (%p148) target = $region20
      $region19: #{residual_block.5} parent=11 // pred_region
        _
      $region20: #{residual_block.5} parent=11 // pred_fallthru
        _
    $region12: #{residual_block.5} parent=5 // pred_fallthru
      _
    %p151 = scmp.lt.s32.totalorder %s10, 2
    // Predicated region
    $region21: #{residual_block.5} parent=5 // pred_check
      %p152 = pneg %p151
    $region22: #{residual_block.5} parent=5 // pred_check_branch
      %154 = sbr.rel (%p152) target = $region24
    $region23: #{residual_block.5} parent=5 // pred_region
      // Predicated region
      $region25: #{residual_block.5} parent=23 // pred_check
        %p155 = pneg %p30
      $region26: #{residual_block.5} parent=23 // pred_check_branch
        %157 = sbr.rel (%p155) target = $region28
      $region27: #{residual_block.5} parent=23 // pred_region
        %p158 = scmp.lt.s32.totalorder %s10, 1
        %s159 = scalar_select %p158, %s10, 1
        %s160 = smul.addr %s159, 2
        %s161 = smul.addr %s160, 8
        %s162 = scalar_lea.vmem %s0, %s161
      $region28: #{residual_block.5} parent=23 // pred_fallthru
        _
      // Predicated region
      $region29: #{residual_block.5} parent=23 // pred_check
        %p163 = pneg %p56
      $region30: #{residual_block.5} parent=23 // pred_check_branch
        %165 = sbr.rel (%p163) target = $region32
      $region31: #{residual_block.5} parent=23 // pred_region
        %p166 = scmp.lt.s32.totalorder %s10, 1
        %s167 = scalar_select %p166, %s10, 1
        %s168 = smul.addr %s167, 2
        %s169 = smul.addr %s168, 8
        %s170 = scalar_lea.vmem %s1, %s169
      $region32: #{residual_block.5} parent=23 // pred_fallthru
        _
    $region24: #{residual_block.5} parent=5 // pred_fallthru
      _
    %p171 = scmp.le.s32.totalorder 1, %s10
    %p172 = scmp.lt.s32.totalorder %s10, 3
    %p173 = pnand %p171, %p172
    %p174 = pneg %p173
    // Predicated region
    $region33: #{residual_block.5} parent=5 // pred_check
      _
    $region34: #{residual_block.5} parent=5 // pred_check_branch
      %176 = sbr.rel (%p173) target = $region36
    $region35: #{residual_block.5} parent=5 // pred_region
      %s177 = ssub.s32 %s10, 1
      %p178 = scmp.lt.s32.totalorder %s15, 1
      %s179 = scalar_select %p178, %s15, 1
      %s180 = smul.addr %s179, 2
      %s181 = smul.addr %s180, 8
      %s182 = scalar_lea.vmem %s0, %s181
      %p183 = pneg %p36
      %p184 = pneg %p33
      %p185 = scmp.lt.s32.totalorder %s15, 1
      %s186 = scalar_select %p185, %s15, 1
      %s187 = smul.addr %s186, 2
      %s188 = smul.addr %s187, 8
      %s189 = scalar_lea.vmem %s1, %s188
      %p190 = pneg %p62
      %p191 = pneg %p59
      %p192 = pneg %p83
      %p193 = pneg %p80
      %p194 = pneg %p104
      %p195 = pneg %p101
      %p196 = pneg %p130
      %p197 = pneg %p127
      %p198 = scmp.lt.s32.totalorder %s15, 1
      %s199 = scalar_select %p198, %s15, 1
      %s200 = smul.addr %s199, 2
      %s201 = smul.addr %s200, 8
      %s202 = scalar_lea.vmem %s4, %s201
      %p203 = scmp.lt.s32.totalorder %s15, 1
      %s204 = scalar_select %p203, %s15, 1
      %s205 = smul.addr %s204, 2
      %s206 = smul.addr %s205, 8
      %s207 = scalar_lea.vmem %s0, %s206
      %p208 = scmp.lt.s32.totalorder %s15, 1
      %s209 = scalar_select %p208, %s15, 1
      %s210 = smul.addr %s209, 2
      %s211 = smul.addr %s210, 8
      %s212 = scalar_lea.vmem %s1, %s211
      %p213 = scmp.lt.s32.totalorder %s15, 1
      %s214 = scalar_select %p213, %s15, 1
      %s215 = smul.addr %s214, 2
      %s216 = smul.addr %s215, 8
      %s217 = scalar_lea.vmem %s4, %s216
      %v218 = vld [vmem:[%s207] sm:$0xff]
      %v219 = vld [vmem:[%s207 + $0x8] sm:$0xff]
      %v220 = vld [vmem:[%s2] sm:$0x1]
      %v222 = vlaneseq
      %v223 = vshrl.u32 %v222, 7
      %v224 = vsub.s32 0, %v223
      %v225 = vrot.slane %v220, %v224
      %v227 = vmul.f32 %v218, %v225
      %v228 = vmul.f32 %v219, %v225
      %v229 = vld [vmem:[%s3] sm:$0x1]
      %v231 = vlaneseq
      %v232 = vshrl.u32 %v231, 7
      %v233 = vsub.s32 0, %v232
      %v234 = vrot.slane %v229, %v233
      %v236 = vadd.f32 %v227, %v234
      %v237 = vadd.f32 %v228, %v234
      %v238 = vld [vmem:[%s212] sm:$0xff]
      %v239 = vld [vmem:[%s212 + $0x8] sm:$0xff]
      %v240 = vadd.f32 %v236, %v238
      %v241 = vadd.f32 %v237, %v239
      %v242 = vmax.f32 %v240, 0.0
      %v243 = vmax.f32 %v241, 0.0
      %vm244 = vcmask 523264
      %245 = vst.msk [vmem:[%s217] sm:$0xff] %vm244, %v242
      %246 = vst.msk [vmem:[%s217 + $0x8] sm:$0xff] %vm244, %v243
      %p247 = scmp.lt.s32.totalorder %s15, 1
      %s248 = scalar_select %p247, %s15, 1
      %s249 = smul.addr %s248, 2
      %s250 = smul.addr %s249, 8
      %s251 = scalar_lea.vmem %s4, %s250
      // Predicated region
      $region37: #{residual_block.5} parent=35 // pred_check
        %p252 = pneg %p127
      $region38: #{residual_block.5} parent=35 // pred_check_branch
        %254 = sbr.rel (%p252) target = $region40
      $region39: #{residual_block.5} parent=35 // pred_region
        _
      $region40: #{residual_block.5} parent=35 // pred_fallthru
        _
    $region36: #{residual_block.5} parent=5 // pred_fallthru
      _
    %p255 = scmp.le.s32.totalorder 2, %s10
    // Predicated region
    $region41: #{residual_block.5} parent=5 // pred_check
      %p256 = pneg %p255
    $region42: #{residual_block.5} parent=5 // pred_check_branch
      %258 = sbr.rel (%p256) target = $region44
    $region43: #{residual_block.5} parent=5 // pred_region
      %s259 = ssub.s32 %s10, 2
      // Predicated region
      $region45: #{residual_block.5} parent=43 // pred_check
        %p260 = pneg %p133
      $region46: #{residual_block.5} parent=43 // pred_check_branch
        %262 = sbr.rel (%p260) target = $region48
      $region47: #{residual_block.5} parent=43 // pred_region
        %p263 = scmp.lt.s32.totalorder %s16, 1
        %s264 = scalar_select %p263, %s16, 1
        %s265 = smul.addr %s264, 2
        %s266 = smul.addr %s265, 8
        %s267 = scalar_lea.vmem %s4, %s266
      $region48: #{residual_block.5} parent=43 // pred_fallthru
        _
    $region44: #{residual_block.5} parent=5 // pred_fallthru
      _
  $region6: #{residual_block.5} parent=0 // loop_footer
    %s14 = sadd.s32 1, %s10
  $region7: #{residual_block.5} parent=0 // loop_footer_branch
    %9 = sbr.rel target = $region3
  $region8: #{residual_block.5} parent=0 // loop_exit
    _

</llo_original>
